<compile_context>
chip_gen: v5e
topology: v5e:2x2
jax: 0.10.0
libtpu: 0.0.40
codegen_flags: <defaults>
</compile_context>

<pallas_src>
import jax
import jax.numpy as jnp
import numpy as np
from jax.experimental import pallas as pl
from jax.experimental.pallas import tpu as pltpu

EPS = 1e-5
LEAKY_SLOPE = 0.01


def _round_up(n, m):
    return ((n + m - 1) // m) * m


def _ln_lrelu(x, gamma, beta):
    """LayerNorm (biased variance, affine) followed by LeakyReLU, all in f32."""
    mu = jnp.mean(x, axis=-1, keepdims=True)
    xc = x - mu
    var = jnp.mean(xc * xc, axis=-1, keepdims=True)
    x = xc * jax.lax.rsqrt(var + EPS) * gamma + beta
    return jnp.where(x >= 0, x, LEAKY_SLOPE * x)


def mlp_kernel(x_ref, w0_ref, w1_ref, w2_ref, pvec_ref, b2_ref, o_ref):
    # pvec rows: 0=b0 (BN1 folded), 1=ln1_gamma, 2=ln1_beta,
    #            3=b1 (BN2 folded), 4=ln2_gamma, 5=ln2_beta, 6..7 unused.

    # Layer 0: Linear(din, hid) with block-1 BatchNorm (eval affine) pre-folded.
    h = jnp.dot(x_ref[...], w0_ref[...], preferred_element_type=jnp.float32)
    h = h + pvec_ref[0:1, :]

    # Block 1: LayerNorm -> LeakyReLU -> Dropout(eval = id) -> Linear(hid, hid)
    # (block-2 BatchNorm folded into this Linear on the host).
    # TODO(synk): training-mode dropout / BN batch statistics intentionally not emulated.
    h = _ln_lrelu(h, pvec_ref[1:2, :], pvec_ref[2:3, :])
    h = jnp.dot(h.astype(jnp.bfloat16), w1_ref[...], preferred_element_type=jnp.float32)
    h = h + pvec_ref[3:4, :]

    # Block 2: LayerNorm -> LeakyReLU -> Dropout(eval = id) -> Linear(hid, dout_pad)
    h = _ln_lrelu(h, pvec_ref[4:5, :], pvec_ref[5:6, :])
    h = jnp.dot(h.astype(jnp.bfloat16), w2_ref[...], preferred_element_type=jnp.float32)
    o_ref[...] = (h + b2_ref[...]).astype(o_ref.dtype)


def prepare_params(p):
    """Host-side, one-time: fold BN, transpose weights, pad lanes, stack vectors."""
    hid = p["w0"].shape[0]
    din = p["w0"].shape[1]
    dout = p["w2"].shape[0]
    assert hid % 128 == 0, "hid must be a multiple of 128 (LayerNorm runs over unpadded lanes)"

    def bn_affine(g, b, m, v):
        s = g * jax.lax.rsqrt(v + EPS)
        return s, b - m * s

    s1, t1 = bn_affine(p["bn1_gamma"], p["bn1_beta"], p["bn1_mean"], p["bn1_var"])
    s2, t2 = bn_affine(p["bn2_gamma"], p["bn2_beta"], p["bn2_mean"], p["bn2_var"])

    # Pre-transposed (in, out) weights; each block's BN folded into the Linear
    # that feeds it:  BN(x @ W^T + b) = x @ (W^T * s) + (b * s + t).
    w0t = p["w0"].T * s1              # (din, hid)
    b0f = p["b0"] * s1 + t1           # (1, hid)
    w1t = p["w1"].T * s2              # (hid, hid)
    b1f = p["b1"] * s2 + t2           # (1, hid)
    w2t = p["w2"].T                   # (hid, dout)
    b2 = p["b2"]                      # (1, dout)

    din_pad = _round_up(din, 128)
    dout_pad = _round_up(dout, 128)
    w0t = jnp.pad(w0t, ((0, din_pad - din), (0, 0)))
    w2t = jnp.pad(w2t, ((0, 0), (0, dout_pad - dout)))
    b2 = jnp.pad(b2, ((0, 0), (0, dout_pad - dout)))

    rows = jnp.concatenate(
        [b0f, p["ln1_gamma"], p["ln1_beta"], b1f, p["ln2_gamma"], p["ln2_beta"]],
        axis=0,
    )
    pvec = jnp.zeros((8, hid), jnp.float32).at[0:6, :].set(rows)

    return {
        "w0": w0t.astype(jnp.bfloat16),
        "w1": w1t.astype(jnp.bfloat16),
        "w2": w2t.astype(jnp.bfloat16),
        "pvec": pvec,                      # f32: biases + LN affine params
        "b2": b2.astype(jnp.float32),
        "dout": dout,
    }


def mlp_forward(x, prep, *, batch_tile=128):
    """x: (N, din) float32. prep: output of prepare_params. Returns (N, dout) f32."""
    N, din = x.shape
    din_pad, hid = prep["w0"].shape
    dout_pad = prep["w2"].shape[1]
    dout = prep["dout"]
    batch_tile = min(batch_tile, N)
    assert N % batch_tile == 0

    # Pad input lanes to 128 and cast once to the matmul dtype (halves x DMA bytes).
    x_p = jnp.pad(x, ((0, 0), (0, din_pad - din))).astype(jnp.bfloat16)

    def full(shape):
        # Whole parameter array, identical (resident) for every grid step.
        return pl.BlockSpec(shape, lambda i: (0, 0))

    out = pl.pallas_call(
        mlp_kernel,
        out_shape=jax.ShapeDtypeStruct((N, dout_pad), jnp.float32),
        grid_spec=pltpu.PrefetchScalarGridSpec(
            num_scalar_prefetch=0,
            grid=(N // batch_tile,),
            in_specs=[
                pl.BlockSpec((batch_tile, din_pad), lambda i: (i, 0)),
                full((din_pad, hid)),
                full((hid, hid)),
                full((hid, dout_pad)),
                full((8, hid)),
                full((1, dout_pad)),
            ],
            out_specs=pl.BlockSpec((batch_tile, dout_pad), lambda i: (i, 0)),
        ),
        compiler_params=pltpu.CompilerParams(
            dimension_semantics=("parallel",),
            vmem_limit_bytes=32 * 1024 * 1024,
        ),
    )(x_p, prep["w0"], prep["w1"], prep["w2"], prep["pvec"], prep["b2"])

    return out[:, :dout]


def init_params(key, din, hid, dout):
    """Linear init mirroring nn.Linear defaults; norm params randomized so the
    BatchNorm fold and LayerNorm affine are actually exercised by the test."""
    keys = jax.random.split(key, 8)

    def linear_init(kw, kb, fan_in, fan_out):
        bound = 1.0 / np.sqrt(fan_in)
        w = jax.random.uniform(kw, (fan_out, fan_in), jnp.float32, -bound, bound)
        b = jax.random.uniform(kb, (1, fan_out), jnp.float32, -bound, bound)
        return w, b

    w0, b0 = linear_init(keys[0], keys[1], din, hid)
    w1, b1 = linear_init(keys[2], keys[3], hid, hid)
    w2, b2 = linear_init(keys[4], keys[5], hid, dout)

    def norm_params(k, d):
        k1, k2, k3, k4, k5, k6 = jax.random.split(k, 6)
        return (
            jax.random.uniform(k1, (1, d), jnp.float32, 0.5, 1.5),    # bn gamma
            jax.random.uniform(k2, (1, d), jnp.float32, -0.1, 0.1),   # bn beta
            jax.random.uniform(k3, (1, d), jnp.float32, -0.5, 0.5),   # bn running mean
            jax.random.uniform(k4, (1, d), jnp.float32, 0.5, 1.5),    # bn running var
            jax.random.uniform(k5, (1, d), jnp.float32, 0.5, 1.5),    # ln gamma
            jax.random.uniform(k6, (1, d), jnp.float32, -0.1, 0.1),   # ln beta
        )

    bn1g, bn1b, bn1m, bn1v, ln1g, ln1b = norm_params(keys[6], hid)
    bn2g, bn2b, bn2m, bn2v, ln2g, ln2b = norm_params(keys[7], hid)

    return {
        "w0": w0, "b0": b0,
        "bn1_gamma": bn1g, "bn1_beta": bn1b, "bn1_mean": bn1m, "bn1_var": bn1v,
        "ln1_gamma": ln1g, "ln1_beta": ln1b,
        "w1": w1, "b1": b1,
        "bn2_gamma": bn2g, "bn2_beta": bn2b, "bn2_mean": bn2m, "bn2_var": bn2v,
        "ln2_gamma": ln2g, "ln2_beta": ln2b,
        "w2": w2, "b2": b2,
    }


def mlp_reference(x, p):
    """Pure-JAX f32 reference, unfolded, matching the PyTorch module in eval mode."""
    def fc(h, bng, bnb, bnm, bnv, lng, lnb, w, b):
        h = (h - bnm) / jnp.sqrt(bnv + EPS) * bng + bnb
        mu = jnp.mean(h, axis=-1, keepdims=True)
        var = jnp.mean((h - mu) ** 2, axis=-1, keepdims=True)
        h = (h - mu) / jnp.sqrt(var + EPS) * lng + lnb
        h = jnp.where(h >= 0, h, LEAKY_SLOPE * h)
        return h @ w.T + b

    h = x @ p["w0"].T + p["b0"]
    h = fc(h, p["bn1_gamma"], p["bn1_beta"], p["bn1_mean"], p["bn1_var"],
           p["ln1_gamma"], p["ln1_beta"], p["w1"], p["b1"])
    h = fc(h, p["bn2_gamma"], p["bn2_beta"], p["bn2_mean"], p["bn2_var"],
           p["ln2_gamma"], p["ln2_beta"], p["w2"], p["b2"])
    return h


if __name__ == "__main__":
    # Shapes consistent with MLP(din, hid=256, dout, n_layers=3) from the spec.
    N, din, hid, dout = 256, 64, 256, 10

    key = jax.random.PRNGKey(0)
    kx, kp = jax.random.split(key)
    x = jax.random.normal(kx, (N, din), dtype=jnp.float32)
    params = init_params(kp, din, hid, dout)

    prep = prepare_params(params)                 # one-time host-side prep
    out = mlp_forward(x, prep, batch_tile=128)    # grid = (2,) -> both TCs on v7x
    out = jax.block_until_ready(out)

    ref = mlp_reference(x, params)
    # bf16 matmul operands with f32 accumulation -> relaxed tolerance.
    np.testing.assert_allclose(np.asarray(out), np.asarray(ref), rtol=2e-2, atol=2e-2)

    print("KERNEL_OK")
</pallas_src>

<mosaic_0001>
module attributes {stable_mosaic.version = 11 : i64} {
  func.func @mlp_kernel(%arg0: i32, %arg1: memref<128x128xbf16, #tpu.memory_space<vmem>>, %arg2: memref<128x256xbf16, #tpu.memory_space<vmem>>, %arg3: memref<256x256xbf16, #tpu.memory_space<vmem>>, %arg4: memref<256x128xbf16, #tpu.memory_space<vmem>>, %arg5: memref<8x256xf32, #tpu.memory_space<vmem>>, %arg6: memref<1x128xf32, #tpu.memory_space<vmem>>, %arg7: memref<128x128xf32, #tpu.memory_space<vmem>>) attributes {dimension_semantics = [#tpu.dimension_semantics<parallel>], iteration_bounds = array<i64: 2>, scalar_prefetch = 0 : i64, scratch_operands = 0 : i64, tpu.core_type = #tpu.core_type<tc>, window_params = [{transform_indices = @transform_0, window_bounds = array<i64: 128, 128>}, {pipeline_mode = #tpu.pipeline_mode<synchronous>, transform_indices = @transform_1, window_bounds = array<i64: 128, 256>}, {pipeline_mode = #tpu.pipeline_mode<synchronous>, transform_indices = @transform_2, window_bounds = array<i64: 256, 256>}, {pipeline_mode = #tpu.pipeline_mode<synchronous>, transform_indices = @transform_3, window_bounds = array<i64: 256, 128>}, {pipeline_mode = #tpu.pipeline_mode<synchronous>, transform_indices = @transform_4, window_bounds = array<i64: 8, 256>}, {pipeline_mode = #tpu.pipeline_mode<synchronous>, transform_indices = @transform_5, window_bounds = array<i64: 1, 128>}, {transform_indices = @transform_6, window_bounds = array<i64: 128, 128>}]} {
    %c0 = arith.constant 0 : index
    %c0_0 = arith.constant 0 : index
    %0 = vector.load %arg1[%c0, %c0_0] : memref<128x128xbf16, #tpu.memory_space<vmem>>, vector<128x128xbf16>
    %c0_1 = arith.constant 0 : index
    %c0_2 = arith.constant 0 : index
    %1 = vector.load %arg2[%c0_1, %c0_2] : memref<128x256xbf16, #tpu.memory_space<vmem>>, vector<128x256xbf16>
    %cst = arith.constant dense<0.000000e+00> : vector<128x256xf32>
    %2 = tpu.matmul %0, %1, %cst {dimension_numbers = #tpu.dot_dimension_numbers<[1], [0], [0], [1], [0, 0, 1, 1], [], []>} : vector<128x128xbf16>, vector<128x256xbf16>, vector<128x256xf32> -> vector<128x256xf32>
    %c0_3 = arith.constant 0 : index
    %c0_4 = arith.constant 0 : index
    %3 = vector.load %arg5[%c0_3, %c0_4] : memref<8x256xf32, #tpu.memory_space<vmem>>, vector<1x256xf32>
    %4 = vector.broadcast %3 : vector<1x256xf32> to vector<128x256xf32>
    %5 = arith.addf %2, %4 : vector<128x256xf32>
    %c1 = arith.constant 1 : index
    %c0_5 = arith.constant 0 : index
    %6 = vector.load %arg5[%c1, %c0_5] : memref<8x256xf32, #tpu.memory_space<vmem>>, vector<1x256xf32>
    %c2 = arith.constant 2 : index
    %c0_6 = arith.constant 0 : index
    %7 = vector.load %arg5[%c2, %c0_6] : memref<8x256xf32, #tpu.memory_space<vmem>>, vector<1x256xf32>
    %cst_7 = arith.constant dense<0.000000e+00> : vector<128xf32>
    %8 = vector.multi_reduction <add>, %5, %cst_7 [1] : vector<128x256xf32> to vector<128xf32>
    %9 = vector.shape_cast %8 : vector<128xf32> to vector<128x1xf32>
    %cst_8 = arith.constant 2.560000e+02 : f32
    %10 = vector.broadcast %cst_8 : f32 to vector<128x1xf32>
    %11 = arith.divf %9, %10 : vector<128x1xf32>
    %12 = vector.broadcast %11 : vector<128x1xf32> to vector<128x256xf32>
    %13 = arith.subf %5, %12 : vector<128x256xf32>
    %14 = arith.mulf %13, %13 : vector<128x256xf32>
    %cst_9 = arith.constant dense<0.000000e+00> : vector<128xf32>
    %15 = vector.multi_reduction <add>, %14, %cst_9 [1] : vector<128x256xf32> to vector<128xf32>
    %16 = vector.shape_cast %15 : vector<128xf32> to vector<128x1xf32>
    %cst_10 = arith.constant 2.560000e+02 : f32
    %17 = vector.broadcast %cst_10 : f32 to vector<128x1xf32>
    %18 = arith.divf %16, %17 : vector<128x1xf32>
    %cst_11 = arith.constant 9.99999974E-6 : f32
    %19 = vector.broadcast %cst_11 : f32 to vector<128x1xf32>
    %20 = arith.addf %18, %19 : vector<128x1xf32>
    %21 = math.rsqrt %20 : vector<128x1xf32>
    %22 = vector.broadcast %21 : vector<128x1xf32> to vector<128x256xf32>
    %23 = arith.mulf %13, %22 : vector<128x256xf32>
    %24 = vector.broadcast %6 : vector<1x256xf32> to vector<128x256xf32>
    %25 = arith.mulf %23, %24 : vector<128x256xf32>
    %26 = vector.broadcast %7 : vector<1x256xf32> to vector<128x256xf32>
    %27 = arith.addf %25, %26 : vector<128x256xf32>
    %cst_12 = arith.constant 0.000000e+00 : f32
    %28 = vector.broadcast %cst_12 : f32 to vector<128x256xf32>
    %29 = arith.cmpf oge, %27, %28 : vector<128x256xf32>
    %cst_13 = arith.constant 0.00999999977 : f32
    %30 = vector.broadcast %cst_13 : f32 to vector<128x256xf32>
    %31 = arith.mulf %30, %27 : vector<128x256xf32>
    %32 = arith.select %29, %27, %31 : vector<128x256xi1>, vector<128x256xf32>
    %33 = arith.truncf %32 : vector<128x256xf32> to vector<128x256xbf16>
    %c0_14 = arith.constant 0 : index
    %c0_15 = arith.constant 0 : index
    %34 = vector.load %arg3[%c0_14, %c0_15] : memref<256x256xbf16, #tpu.memory_space<vmem>>, vector<256x256xbf16>
    %cst_16 = arith.constant dense<0.000000e+00> : vector<128x256xf32>
    %35 = tpu.matmul %33, %34, %cst_16 {dimension_numbers = #tpu.dot_dimension_numbers<[1], [0], [0], [1], [0, 0, 1, 1], [], []>} : vector<128x256xbf16>, vector<256x256xbf16>, vector<128x256xf32> -> vector<128x256xf32>
    %c3 = arith.constant 3 : index
    %c0_17 = arith.constant 0 : index
    %36 = vector.load %arg5[%c3, %c0_17] : memref<8x256xf32, #tpu.memory_space<vmem>>, vector<1x256xf32>
    %37 = vector.broadcast %36 : vector<1x256xf32> to vector<128x256xf32>
    %38 = arith.addf %35, %37 : vector<128x256xf32>
    %c4 = arith.constant 4 : index
    %c0_18 = arith.constant 0 : index
    %39 = vector.load %arg5[%c4, %c0_18] : memref<8x256xf32, #tpu.memory_space<vmem>>, vector<1x256xf32>
    %c5 = arith.constant 5 : index
    %c0_19 = arith.constant 0 : index
    %40 = vector.load %arg5[%c5, %c0_19] : memref<8x256xf32, #tpu.memory_space<vmem>>, vector<1x256xf32>
    %cst_20 = arith.constant dense<0.000000e+00> : vector<128xf32>
    %41 = vector.multi_reduction <add>, %38, %cst_20 [1] : vector<128x256xf32> to vector<128xf32>
    %42 = vector.shape_cast %41 : vector<128xf32> to vector<128x1xf32>
    %cst_21 = arith.constant 2.560000e+02 : f32
    %43 = vector.broadcast %cst_21 : f32 to vector<128x1xf32>
    %44 = arith.divf %42, %43 : vector<128x1xf32>
    %45 = vector.broadcast %44 : vector<128x1xf32> to vector<128x256xf32>
    %46 = arith.subf %38, %45 : vector<128x256xf32>
    %47 = arith.mulf %46, %46 : vector<128x256xf32>
    %cst_22 = arith.constant dense<0.000000e+00> : vector<128xf32>
    %48 = vector.multi_reduction <add>, %47, %cst_22 [1] : vector<128x256xf32> to vector<128xf32>
    %49 = vector.shape_cast %48 : vector<128xf32> to vector<128x1xf32>
    %cst_23 = arith.constant 2.560000e+02 : f32
    %50 = vector.broadcast %cst_23 : f32 to vector<128x1xf32>
    %51 = arith.divf %49, %50 : vector<128x1xf32>
    %cst_24 = arith.constant 9.99999974E-6 : f32
    %52 = vector.broadcast %cst_24 : f32 to vector<128x1xf32>
    %53 = arith.addf %51, %52 : vector<128x1xf32>
    %54 = math.rsqrt %53 : vector<128x1xf32>
    %55 = vector.broadcast %54 : vector<128x1xf32> to vector<128x256xf32>
    %56 = arith.mulf %46, %55 : vector<128x256xf32>
    %57 = vector.broadcast %39 : vector<1x256xf32> to vector<128x256xf32>
    %58 = arith.mulf %56, %57 : vector<128x256xf32>
    %59 = vector.broadcast %40 : vector<1x256xf32> to vector<128x256xf32>
    %60 = arith.addf %58, %59 : vector<128x256xf32>
    %cst_25 = arith.constant 0.000000e+00 : f32
    %61 = vector.broadcast %cst_25 : f32 to vector<128x256xf32>
    %62 = arith.cmpf oge, %60, %61 : vector<128x256xf32>
    %cst_26 = arith.constant 0.00999999977 : f32
    %63 = vector.broadcast %cst_26 : f32 to vector<128x256xf32>
    %64 = arith.mulf %63, %60 : vector<128x256xf32>
    %65 = arith.select %62, %60, %64 : vector<128x256xi1>, vector<128x256xf32>
    %66 = arith.truncf %65 : vector<128x256xf32> to vector<128x256xbf16>
    %c0_27 = arith.constant 0 : index
    %c0_28 = arith.constant 0 : index
    %67 = vector.load %arg4[%c0_27, %c0_28] : memref<256x128xbf16, #tpu.memory_space<vmem>>, vector<256x128xbf16>
    %cst_29 = arith.constant dense<0.000000e+00> : vector<128x128xf32>
    %68 = tpu.matmul %66, %67, %cst_29 {dimension_numbers = #tpu.dot_dimension_numbers<[1], [0], [0], [1], [0, 0, 1, 1], [], []>} : vector<128x256xbf16>, vector<256x128xbf16>, vector<128x128xf32> -> vector<128x128xf32>
    %c0_30 = arith.constant 0 : index
    %c0_31 = arith.constant 0 : index
    %69 = vector.load %arg6[%c0_30, %c0_31] : memref<1x128xf32, #tpu.memory_space<vmem>>, vector<1x128xf32>
    %70 = vector.broadcast %69 : vector<1x128xf32> to vector<128x128xf32>
    %71 = arith.addf %68, %70 : vector<128x128xf32>
    %c0_32 = arith.constant 0 : index
    %c0_33 = arith.constant 0 : index
    %72 = vector.load %arg7[%c0_32, %c0_33] : memref<128x128xf32, #tpu.memory_space<vmem>>, vector<128x128xf32>
    tpu.vector_store %arg7[%c0_32, %c0_33], %71 {strides = array<i32>} : memref<128x128xf32, #tpu.memory_space<vmem>>, vector<128x128xf32>,
    return
  }
  func.func @transform_0(%arg0: i32) -> (i32, i32) {
    %c0_i32 = arith.constant 0 : i32
    %c0_i32_0 = arith.constant 0 : i32
    return %arg0, %c0_i32 : i32, i32
  }
  func.func @transform_1(%arg0: i32) -> (i32, i32) {
    %c0_i32 = arith.constant 0 : i32
    %c0_i32_0 = arith.constant 0 : i32
    %c0_i32_1 = arith.constant 0 : i32
    return %c0_i32, %c0_i32_0 : i32, i32
  }
  func.func @transform_2(%arg0: i32) -> (i32, i32) {
    %c0_i32 = arith.constant 0 : i32
    %c0_i32_0 = arith.constant 0 : i32
    %c0_i32_1 = arith.constant 0 : i32
    return %c0_i32, %c0_i32_0 : i32, i32
  }
  func.func @transform_3(%arg0: i32) -> (i32, i32) {
    %c0_i32 = arith.constant 0 : i32
    %c0_i32_0 = arith.constant 0 : i32
    %c0_i32_1 = arith.constant 0 : i32
    return %c0_i32, %c0_i32_0 : i32, i32
  }
  func.func @transform_4(%arg0: i32) -> (i32, i32) {
    %c0_i32 = arith.constant 0 : i32
    %c0_i32_0 = arith.constant 0 : i32
    %c0_i32_1 = arith.constant 0 : i32
    return %c0_i32, %c0_i32_0 : i32, i32
  }
  func.func @transform_5(%arg0: i32) -> (i32, i32) {
    %c0_i32 = arith.constant 0 : i32
    %c0_i32_0 = arith.constant 0 : i32
    %c0_i32_1 = arith.constant 0 : i32
    return %c0_i32, %c0_i32_0 : i32, i32
  }
  func.func @transform_6(%arg0: i32) -> (i32, i32) {
    %c0_i32 = arith.constant 0 : i32
    %c0_i32_0 = arith.constant 0 : i32
    return %arg0, %c0_i32 : i32, i32
  }
}

</mosaic_0001>

<llo_original>
// kernel: tpu_custom_call.1
$region0: #{tpu_custom_call.1}
  #allocation0 [shape = 'u32[]', space=smem, size = 0x4, offset = 0x4, fixed_abs, tag = 'smem constant byte address 0x4 - core index']
  #allocation1 [shape = 'u32[72,128]{1,0:T(1,128)}', space=vmem, size = 0x9000, scoped, tag = 'internal scratch']
  %s0 = inlined_call_operand.hbm [shape: bf16[256,128], index: 0, kind: input, shape index: {}]
  %s1 = inlined_call_operand.hbm [shape: bf16[128,256], index: 1, kind: input, shape index: {}]
  %s2 = inlined_call_operand.hbm [shape: bf16[256,256], index: 2, kind: input, shape index: {}]
  %s3 = inlined_call_operand.hbm [shape: bf16[256,128], index: 3, kind: input, shape index: {}]
  %s4 = inlined_call_operand.hbm [shape: f32[8,256], index: 4, kind: input, shape index: {}]
  %s5 = inlined_call_operand.vmem [shape: f32[1,128], index: 5, kind: input, shape index: {}]
  %s6 = inlined_call_operand.hbm [shape: f32[256,128], index: 6, kind: output, shape index: {}]
  %s7 = sld [smem:[#allocation0]]
  $region77: #{tpu_custom_call.1} parent=0
    _
  %s9 = ssub.s32 1, %s7
  %s10 = scalar_select 0, %s9, %s7
  $region1: #{tpu_custom_call.1} parent=0
    #allocation2 [shape = 'u8[65536]{0}', space=vmem, size = 0x10000, scoped, tag = 'input window, operand 0']
    #allocation3 [shape = 's32[2]{0}', space=sflag, size = 0x8, scoped, tag = 'scoped memory for tpu_custom_call.1']
    #allocation4 [shape = 's32[2]{0}', space=sflag, size = 0x8, scoped, tag = 'scoped memory for tpu_custom_call.1']
    #allocation5 [shape = 'u8[65536]{0}', space=vmem, size = 0x10000, scoped, tag = 'input window, operand 1, single buffered']
    #allocation6 [shape = 's32[1]{0}', space=sflag, size = 0x4, scoped, tag = 'scoped memory for tpu_custom_call.1']
    #allocation7 [shape = 'u8[131072]{0}', space=vmem, size = 0x20000, scoped, tag = 'input window, operand 2, single buffered']
    #allocation8 [shape = 'u8[65536]{0}', space=vmem, size = 0x10000, scoped, tag = 'input window, operand 3, single buffered']
    #allocation9 [shape = 's32[1]{0}', space=sflag, size = 0x4, scoped, tag = 'scoped memory for tpu_custom_call.1']
    #allocation10 [shape = 'u8[8192]{0}', space=vmem, size = 0x2000, scoped, tag = 'input window, operand 4, single buffered']
    #allocation11 [shape = 'u8[131072]{0}', space=vmem, size = 0x20000, scoped, tag = 'output window, operand 0']
    %11 = vsyncpa [#allocation3], 0
    %s12 = scalar_lea.sflag [#allocation3], 1
    %13 = vsyncpa %s12, 0
    %14 = vsyncpa [#allocation6], 0
    %15 = vsyncpa [#allocation9], 0
    %16 = vsyncpa [#allocation4], 0
    %s17 = scalar_lea.sflag [#allocation4], 1
    %18 = vsyncpa %s17, 0
    loop: start=0, step=1, limit=4
    $region2: #{tpu_custom_call.1} parent=1 // loop_pre_header
      _
    $region3: #{tpu_custom_call.1} parent=1 // loop_header
      %s20 = sphi 0, %s24
      %p21 = scmp.ge.s32.totalorder %s20, 4
      %s30 = sphi 0, %s32
      %s33 = sphi 0, %s30
      %s34 = sphi 0, %s33
      %s50 = sphi 0, %s34
      %s54 = sphi 0, %s54
      %s56 = sphi 0, %s54
      %s57 = sphi 0, %s56
      %s71 = sphi 0, %s57
      %s75 = sphi 0, %s75
      %s77 = sphi 0, %s75
      %s78 = sphi 0, %s77
      %s92 = sphi 0, %s78
      %s96 = sphi 0, %s96
      %s98 = sphi 0, %s96
      %s99 = sphi 0, %s98
      %s113 = sphi 0, %s99
      %s117 = sphi 0, %s117
      %s119 = sphi 0, %s117
      %s120 = sphi 0, %s119
      %s134 = sphi 0, %s120
      %s138 = sphi 0, %s138
      %s140 = sphi 0, %s138
      %s141 = sphi 0, %s140
      %s155 = sphi 0, %s141
      %s161 = sphi 0, %s163
      %s164 = sphi 0, %s161
      %s165 = sphi 0, %s164
      %s181 = sphi 0, %s165
    $region4: #{tpu_custom_call.1} parent=1 // loop_header_branch
      %23 = sbr.rel (%p21) target = $region8
    $region5: #{tpu_custom_call.1} parent=1 // loop_body
      %s25 = ssub.s32 %s20, 1
      %s26 = ssub.s32 %s20, 2
      %s27 = sadd.s32 %s20, 1
      %s28 = ssub.s32 %s20, %s27
      %p29 = scmp.eq.s32.totalorder %s28, 0
      %s31 = sadd.s32 %s30, 1
      %s32 = scalar_select %p29, %s30, %s31
      %p35 = pneg %p29
      %p36 = scmp.eq.s32.totalorder %s20, 1
      %p37 = por %p35, %p36
      %p38 = scmp.ne.s32.totalorder %s30, %s33
      %p39 = scmp.eq.s32.totalorder %s20, 0
      %p40 = por %p38, %p39
      %p41 = scmp.ne.s32.totalorder %s30, %s33
      %p42 = scmp.eq.s32.totalorder %s25, 1
      %p43 = por %p41, %p42
      %p44 = scmp.ne.s32.totalorder %s33, %s34
      %p45 = scmp.eq.s32.totalorder %s25, 0
      %p46 = por %p44, %p45
      %p47 = scmp.ne.s32.totalorder %s33, %s34
      %p48 = scmp.eq.s32.totalorder %s26, 1
      %p49 = por %p47, %p48
      %p51 = scmp.ne.s32.totalorder %s34, %s50
      %p52 = scmp.eq.s32.totalorder %s26, 0
      %p53 = por %p51, %p52
      %s55 = sadd.s32 %s54, 1
      %p58 = scmp.eq.s32.totalorder %s20, 1
      %p59 = scmp.ne.s32.totalorder %s54, %s56
      %p60 = scmp.eq.s32.totalorder %s20, 0
      %p61 = por %p59, %p60
      %p62 = scmp.ne.s32.totalorder %s54, %s56
      %p63 = scmp.eq.s32.totalorder %s25, 1
      %p64 = por %p62, %p63
      %p65 = scmp.ne.s32.totalorder %s56, %s57
      %p66 = scmp.eq.s32.totalorder %s25, 0
      %p67 = por %p65, %p66
      %p68 = scmp.ne.s32.totalorder %s56, %s57
      %p69 = scmp.eq.s32.totalorder %s26, 1
      %p70 = por %p68, %p69
      %p72 = scmp.ne.s32.totalorder %s57, %s71
      %p73 = scmp.eq.s32.totalorder %s26, 0
      %p74 = por %p72, %p73
      %s76 = sadd.s32 %s75, 1
      %p79 = scmp.eq.s32.totalorder %s20, 1
      %p80 = scmp.ne.s32.totalorder %s75, %s77
      %p81 = scmp.eq.s32.totalorder %s20, 0
      %p82 = por %p80, %p81
      %p83 = scmp.ne.s32.totalorder %s75, %s77
      %p84 = scmp.eq.s32.totalorder %s25, 1
      %p85 = por %p83, %p84
      %p86 = scmp.ne.s32.totalorder %s77, %s78
      %p87 = scmp.eq.s32.totalorder %s25, 0
      %p88 = por %p86, %p87
      %p89 = scmp.ne.s32.totalorder %s77, %s78
      %p90 = scmp.eq.s32.totalorder %s26, 1
      %p91 = por %p89, %p90
      %p93 = scmp.ne.s32.totalorder %s78, %s92
      %p94 = scmp.eq.s32.totalorder %s26, 0
      %p95 = por %p93, %p94
      %s97 = sadd.s32 %s96, 1
      %p100 = scmp.eq.s32.totalorder %s20, 1
      %p101 = scmp.ne.s32.totalorder %s96, %s98
      %p102 = scmp.eq.s32.totalorder %s20, 0
      %p103 = por %p101, %p102
      %p104 = scmp.ne.s32.totalorder %s96, %s98
      %p105 = scmp.eq.s32.totalorder %s25, 1
      %p106 = por %p104, %p105
      %p107 = scmp.ne.s32.totalorder %s98, %s99
      %p108 = scmp.eq.s32.totalorder %s25, 0
      %p109 = por %p107, %p108
      %p110 = scmp.ne.s32.totalorder %s98, %s99
      %p111 = scmp.eq.s32.totalorder %s26, 1
      %p112 = por %p110, %p111
      %p114 = scmp.ne.s32.totalorder %s99, %s113
      %p115 = scmp.eq.s32.totalorder %s26, 0
      %p116 = por %p114, %p115
      %s118 = sadd.s32 %s117, 1
      %p121 = scmp.eq.s32.totalorder %s20, 1
      %p122 = scmp.ne.s32.totalorder %s117, %s119
      %p123 = scmp.eq.s32.totalorder %s20, 0
      %p124 = por %p122, %p123
      %p125 = scmp.ne.s32.totalorder %s117, %s119
      %p126 = scmp.eq.s32.totalorder %s25, 1
      %p127 = por %p125, %p126
      %p128 = scmp.ne.s32.totalorder %s119, %s120
      %p129 = scmp.eq.s32.totalorder %s25, 0
      %p130 = por %p128, %p129
      %p131 = scmp.ne.s32.totalorder %s119, %s120
      %p132 = scmp.eq.s32.totalorder %s26, 1
      %p133 = por %p131, %p132
      %p135 = scmp.ne.s32.totalorder %s120, %s134
      %p136 = scmp.eq.s32.totalorder %s26, 0
      %p137 = por %p135, %p136
      %s139 = sadd.s32 %s138, 1
      %p142 = scmp.eq.s32.totalorder %s20, 1
      %p143 = scmp.ne.s32.totalorder %s138, %s140
      %p144 = scmp.eq.s32.totalorder %s20, 0
      %p145 = por %p143, %p144
      %p146 = scmp.ne.s32.totalorder %s138, %s140
      %p147 = scmp.eq.s32.totalorder %s25, 1
      %p148 = por %p146, %p147
      %p149 = scmp.ne.s32.totalorder %s140, %s141
      %p150 = scmp.eq.s32.totalorder %s25, 0
      %p151 = por %p149, %p150
      %p152 = scmp.ne.s32.totalorder %s140, %s141
      %p153 = scmp.eq.s32.totalorder %s26, 1
      %p154 = por %p152, %p153
      %p156 = scmp.ne.s32.totalorder %s141, %s155
      %p157 = scmp.eq.s32.totalorder %s26, 0
      %p158 = por %p156, %p157
      %s159 = ssub.s32 %s20, %s27
      %p160 = scmp.eq.s32.totalorder %s159, 0
      %s162 = sadd.s32 %s161, 1
      %s163 = scalar_select %p160, %s161, %s162
      %p166 = pneg %p160
      %p167 = scmp.eq.s32.totalorder %s20, 1
      %p168 = por %p166, %p167
      %p169 = scmp.ne.s32.totalorder %s161, %s164
      %p170 = scmp.eq.s32.totalorder %s20, 0
      %p171 = por %p169, %p170
      %p172 = scmp.ne.s32.totalorder %s161, %s164
      %p173 = scmp.eq.s32.totalorder %s25, 1
      %p174 = por %p172, %p173
      %p175 = scmp.ne.s32.totalorder %s164, %s165
      %p176 = scmp.eq.s32.totalorder %s25, 0
      %p177 = por %p175, %p176
      %p178 = scmp.ne.s32.totalorder %s164, %s165
      %p179 = scmp.eq.s32.totalorder %s26, 1
      %p180 = por %p178, %p179
      %p182 = scmp.ne.s32.totalorder %s165, %s181
      %p183 = scmp.eq.s32.totalorder %s26, 0
      %p184 = por %p182, %p183
      %p185 = scmp.le.s32.totalorder 1, %s20
      %p186 = scmp.lt.s32.totalorder %s20, 3
      %p187 = pnand %p185, %p186
      %p188 = pneg %p187
      // Predicated region
      $region9: #{tpu_custom_call.1} parent=5 // pred_check
        _
      $region10: #{tpu_custom_call.1} parent=5 // pred_check_branch
        %190 = sbr.rel (%p187) target = $region12
      $region11: #{tpu_custom_call.1} parent=5 // pred_region
        %s191 = ssub.s32 %s20, 1
        // Predicated region
        $region13: #{tpu_custom_call.1} parent=11 // pred_check
          %p192 = pneg %p67
        $region14: #{tpu_custom_call.1} parent=11 // pred_check_branch
          %194 = sbr.rel (%p192) target = $region16
        $region15: #{tpu_custom_call.1} parent=11 // pred_region
          %196 = vsyncadd [#allocation6], 0
          %s197 = sshll.u32 %s1, 4
          %s198 = int_to_ptr.hbm [resolvable:$true] %s197
          %s199 = sshll.u32 [#allocation5], 4
          %s200 = int_to_ptr.vmem [resolvable:$true] %s199
          %205 = dma.hbm_to_vmem [thread:$0]  %s198, 2048, %s200, [#allocation6], 128, 128, 8
        $region16: #{tpu_custom_call.1} parent=11 // pred_fallthru
          _
        // Predicated region
        $region17: #{tpu_custom_call.1} parent=11 // pred_check
          %p206 = pneg %p88
        $region18: #{tpu_custom_call.1} parent=11 // pred_check_branch
          %208 = sbr.rel (%p206) target = $region20
        $region19: #{tpu_custom_call.1} parent=11 // pred_region
          %210 = vsyncadd [#allocation6], 0
          %s211 = sshll.u32 %s2, 4
          %s212 = int_to_ptr.hbm [resolvable:$true] %s211
          %s213 = sshll.u32 [#allocation7], 4
          %s214 = int_to_ptr.vmem [resolvable:$true] %s213
          %219 = dma.hbm_to_vmem [thread:$0]  %s212, 4096, %s214, [#allocation6], 128, 128, 8
        $region20: #{tpu_custom_call.1} parent=11 // pred_fallthru
          _
        // Predicated region
        $region21: #{tpu_custom_call.1} parent=11 // pred_check
          %p220 = pneg %p109
        $region22: #{tpu_custom_call.1} parent=11 // pred_check_branch
          %222 = sbr.rel (%p220) target = $region24
        $region23: #{tpu_custom_call.1} parent=11 // pred_region
          %224 = vsyncadd [#allocation9], 0
          %s225 = sshll.u32 %s3, 4
          %s226 = int_to_ptr.hbm [resolvable:$true] %s225
          %s227 = sshll.u32 [#allocation8], 4
          %s228 = int_to_ptr.vmem [resolvable:$true] %s227
          %233 = dma.hbm_to_vmem [thread:$0]  %s226, 2048, %s228, [#allocation9], 64, 64, 4
        $region24: #{tpu_custom_call.1} parent=11 // pred_fallthru
          _
        // Predicated region
        $region25: #{tpu_custom_call.1} parent=11 // pred_check
          %p234 = pneg %p130
        $region26: #{tpu_custom_call.1} parent=11 // pred_check_branch
          %236 = sbr.rel (%p234) target = $region28
        $region27: #{tpu_custom_call.1} parent=11 // pred_region
          %238 = vsyncadd [#allocation9], 0
          %s240 = sshll.u32 %s4, 4
          %s241 = int_to_ptr.hbm [resolvable:$true] %s240
          %s242 = sshll.u32 [#allocation10], 4
          %s243 = int_to_ptr.vmem [resolvable:$true] %s242
          %245 = dma.hbm_to_vmem [thread:$0]  %s241, 256, %s243, [#allocation9]
        $region28: #{tpu_custom_call.1} parent=11 // pred_fallthru
          _
        // Predicated region
        $region29: #{tpu_custom_call.1} parent=11 // pred_check
          %p246 = pneg %p151
        $region30: #{tpu_custom_call.1} parent=11 // pred_check_branch
          %248 = sbr.rel (%p246) target = $region32
        $region31: #{tpu_custom_call.1} parent=11 // pred_region
          _
        $region32: #{tpu_custom_call.1} parent=11 // pred_fallthru
          _
      $region12: #{tpu_custom_call.1} parent=5 // pred_fallthru
        _
      %p249 = scmp.lt.s32.totalorder %s20, 2
      // Predicated region
      $region33: #{tpu_custom_call.1} parent=5 // pred_check
        %p250 = pneg %p249
      $region34: #{tpu_custom_call.1} parent=5 // pred_check_branch
        %252 = sbr.rel (%p250) target = $region36
      $region35: #{tpu_custom_call.1} parent=5 // pred_region
        // Predicated region
        $region37: #{tpu_custom_call.1} parent=35 // pred_check
          %p253 = pneg %p40
        $region38: #{tpu_custom_call.1} parent=35 // pred_check_branch
          %255 = sbr.rel (%p253) target = $region40
        $region39: #{tpu_custom_call.1} parent=35 // pred_region
          %s256 = sand.u32 %s30, 1
          %s257 = scalar_lea.sflag [#allocation3], %s256
          %s258 = sand.u32 %s30, 1
          %s259 = smul.addr %s258, 64
          %s260 = scalar_lea.vmem [#allocation2], %s259
          %s261 = smul.u32 16, %s20
          %263 = vsyncadd %s257, 0
          %s264 = smul.addr %s261, 4
          %s265 = scalar_lea.hbm %s0, %s264
          %s266 = sshll.u32 %s265, 4
          %s267 = int_to_ptr.hbm [resolvable:$true] %s266
          %s268 = sshll.u32 %s260, 4
          %s269 = int_to_ptr.vmem [resolvable:$true] %s268
          %274 = dma.hbm_to_vmem [thread:$0]  %s267, 1024, %s269, %s257, 64, 64, 4
        $region40: #{tpu_custom_call.1} parent=35 // pred_fallthru
          _
      $region36: #{tpu_custom_call.1} parent=5 // pred_fallthru
        _
      %p275 = scmp.le.s32.totalorder 1, %s20
      %p276 = scmp.lt.s32.totalorder %s20, 3
      %p277 = pnand %p275, %p276
      %p278 = pneg %p277
      // Predicated region
      $region41: #{tpu_custom_call.1} parent=5 // pred_check
        _
      $region42: #{tpu_custom_call.1} parent=5 // pred_check_branch
        %280 = sbr.rel (%p277) target = $region44
      $region43: #{tpu_custom_call.1} parent=5 // pred_region
        %s281 = ssub.s32 %s20, 1
        %s282 = sand.u32 %s33, 1
        %s283 = scalar_lea.sflag [#allocation3], %s282
        %s284 = sand.u32 %s33, 1
        %s285 = smul.addr %s284, 64
        %s286 = scalar_lea.vmem [#allocation2], %s285
        // Predicated region
        $region45: #{tpu_custom_call.1} parent=43 // pred_check
          %p287 = pneg %p46
        $region46: #{tpu_custom_call.1} parent=43 // pred_check_branch
          %289 = sbr.rel (%p287) target = $region48
        $region47: #{tpu_custom_call.1} parent=43 // pred_region
          %291 = dma.done %s283, 1024
        $region48: #{tpu_custom_call.1} parent=43 // pred_fallthru
          _
        // Predicated region
        $region49: #{tpu_custom_call.1} parent=43 // pred_check
          %p292 = pneg %p67
        $region50: #{tpu_custom_call.1} parent=43 // pred_check_branch
          %294 = sbr.rel (%p292) target = $region52
        $region51: #{tpu_custom_call.1} parent=43 // pred_region
          %296 = dma.done [#allocation6], 2048
        $region52: #{tpu_custom_call.1} parent=43 // pred_fallthru
          _
        // Predicated region
        $region53: #{tpu_custom_call.1} parent=43 // pred_check
          %p297 = pneg %p88
        $region54: #{tpu_custom_call.1} parent=43 // pred_check_branch
          %299 = sbr.rel (%p297) target = $region56
        $region55: #{tpu_custom_call.1} parent=43 // pred_region
          %301 = dma.done [#allocation6], 4096
        $region56: #{tpu_custom_call.1} parent=43 // pred_fallthru
          _
        // Predicated region
        $region57: #{tpu_custom_call.1} parent=43 // pred_check
          %p302 = pneg %p109
        $region58: #{tpu_custom_call.1} parent=43 // pred_check_branch
          %304 = sbr.rel (%p302) target = $region60
        $region59: #{tpu_custom_call.1} parent=43 // pred_region
          %306 = dma.done [#allocation9], 2048
        $region60: #{tpu_custom_call.1} parent=43 // pred_fallthru
          _
        // Predicated region
        $region61: #{tpu_custom_call.1} parent=43 // pred_check
          %p307 = pneg %p130
        $region62: #{tpu_custom_call.1} parent=43 // pred_check_branch
          %309 = sbr.rel (%p307) target = $region64
        $region63: #{tpu_custom_call.1} parent=43 // pred_region
          %311 = dma.done [#allocation9], 256
        $region64: #{tpu_custom_call.1} parent=43 // pred_fallthru
          _
        %s312 = sand.u32 %s33, 1
        %s313 = scalar_lea.sflag [#allocation3], %s312
        %s314 = sand.u32 %s33, 1
        %s315 = smul.addr %s314, 64
        %s316 = scalar_lea.vmem [#allocation2], %s315
        %p317 = pneg %p46
        %p318 = pneg %p43
        %p319 = pneg %p67
        %p320 = pneg %p64
        %p321 = pneg %p88
        %p322 = pneg %p85
        %p323 = pneg %p109
        %p324 = pneg %p106
        %p325 = pneg %p130
        %p326 = pneg %p127
        %p327 = pneg %p151
        %p328 = pneg %p148
        %p329 = pneg %p177
        %p330 = pneg %p174
        %s331 = sand.u32 %s164, 1
        %s332 = scalar_lea.sflag [#allocation4], %s331
        %s333 = sand.u32 %s164, 1
        %s334 = smul.addr %s333, 128
        %s335 = scalar_lea.vmem [#allocation11], %s334
        %s336 = smul.u32 16, %s25
        %s337 = smul.u32 16, %s25
        %v338 = vld [vmem:[%s286] sm:$0xf]
        %v339 = vld [vmem:[%s286 + $0x4] sm:$0xf]
        %v340 = vld [vmem:[%s286 + $0x8] sm:$0xf]
        %v341 = vld [vmem:[%s286 + $0xc] sm:$0xf]
        %v342 = vld [vmem:[%s286 + $0x10] sm:$0xf]
        %v343 = vld [vmem:[%s286 + $0x14] sm:$0xf]
        %v344 = vld [vmem:[%s286 + $0x18] sm:$0xf]
        %v345 = vld [vmem:[%s286 + $0x1c] sm:$0xf]
        %v346 = vld [vmem:[%s286 + $0x20] sm:$0xf]
        %v347 = vld [vmem:[%s286 + $0x24] sm:$0xf]
        %v348 = vld [vmem:[%s286 + $0x28] sm:$0xf]
        %v349 = vld [vmem:[%s286 + $0x2c] sm:$0xf]
        %v350 = vld [vmem:[%s286 + $0x30] sm:$0xf]
        %v351 = vld [vmem:[%s286 + $0x34] sm:$0xf]
        %v352 = vld [vmem:[%s286 + $0x38] sm:$0xf]
        %v353 = vld [vmem:[%s286 + $0x3c] sm:$0xf]
        %v354 = vld [vmem:[#allocation5] sm:$0xff]
        %v355 = vld [vmem:[#allocation5 + $0x8] sm:$0xff]
        %v356 = vld [vmem:[#allocation5 + $0x10] sm:$0xff]
        %v357 = vld [vmem:[#allocation5 + $0x18] sm:$0xff]
        %v358 = vld [vmem:[#allocation5 + $0x20] sm:$0xff]
        %v359 = vld [vmem:[#allocation5 + $0x28] sm:$0xff]
        %v360 = vld [vmem:[#allocation5 + $0x30] sm:$0xff]
        %v361 = vld [vmem:[#allocation5 + $0x38] sm:$0xff]
        %v362 = vld [vmem:[#allocation5 + $0x40] sm:$0xff]
        %v363 = vld [vmem:[#allocation5 + $0x48] sm:$0xff]
        %v364 = vld [vmem:[#allocation5 + $0x50] sm:$0xff]
        %v365 = vld [vmem:[#allocation5 + $0x58] sm:$0xff]
        %v366 = vld [vmem:[#allocation5 + $0x60] sm:$0xff]
        %v367 = vld [vmem:[#allocation5 + $0x68] sm:$0xff]
        %v368 = vld [vmem:[#allocation5 + $0x70] sm:$0xff]
        %v369 = vld [vmem:[#allocation5 + $0x78] sm:$0xff]
        %v370 = vld [vmem:[#allocation10] ss:$8 sm:$0x3]
        %v372 = vperm.slane %v370, 0
        %v373 = vperm.slane %v370, 1
        %v392 = vunpack.c.l.b16 %v338
        %v393 = vunpack.c.l.b16 %v339
        %v394 = vunpack.c.l.b16 %v340
        %v395 = vunpack.c.l.b16 %v341
        %v396 = vunpack.c.l.b16 %v342
        %v397 = vunpack.c.l.b16 %v343
        %v398 = vunpack.c.l.b16 %v344
        %v399 = vunpack.c.l.b16 %v345
        %v400 = vunpack.c.l.b16 %v346
        %v401 = vunpack.c.l.b16 %v347
        %v402 = vunpack.c.l.b16 %v348
        %v403 = vunpack.c.l.b16 %v349
        %v404 = vunpack.c.l.b16 %v350
        %v405 = vunpack.c.l.b16 %v351
        %v406 = vunpack.c.l.b16 %v352
        %v407 = vunpack.c.l.b16 %v353
        %v408 = vpack.c.b16 %v393, %v392
        %v409 = vpack.c.b16 %v395, %v394
        %v410 = vpack.c.b16 %v397, %v396
        %v411 = vpack.c.b16 %v399, %v398
        %v412 = vpack.c.b16 %v401, %v400
        %v413 = vpack.c.b16 %v403, %v402
        %v414 = vpack.c.b16 %v405, %v404
        %v415 = vpack.c.b16 %v407, %v406
        %v440 = vunpack.c.l.b16 %v354
        %v441 = vunpack.c.h.b16 %v354
        %v442 = vunpack.c.l.b16 %v355
        %v443 = vunpack.c.h.b16 %v355
        %v444 = vunpack.c.l.b16 %v356
        %v445 = vunpack.c.h.b16 %v356
        %v446 = vunpack.c.l.b16 %v357
        %v447 = vunpack.c.h.b16 %v357
        %v448 = vunpack.c.l.b16 %v358
        %v449 = vunpack.c.h.b16 %v358
        %v450 = vunpack.c.l.b16 %v359
        %v451 = vunpack.c.h.b16 %v359
        %v452 = vunpack.c.l.b16 %v360
        %v453 = vunpack.c.h.b16 %v360
        %v454 = vunpack.c.l.b16 %v361
        %v455 = vunpack.c.h.b16 %v361
        %v456 = vunpack.c.l.b16 %v362
        %v457 = vunpack.c.h.b16 %v362
        %v458 = vunpack.c.l.b16 %v363
        %v459 = vunpack.c.h.b16 %v363
        %v460 = vunpack.c.l.b16 %v364
        %v461 = vunpack.c.h.b16 %v364
        %v462 = vunpack.c.l.b16 %v365
        %v463 = vunpack.c.h.b16 %v365
        %v464 = vunpack.c.l.b16 %v366
        %v465 = vunpack.c.h.b16 %v366
        %v466 = vunpack.c.l.b16 %v367
        %v467 = vunpack.c.h.b16 %v367
        %v468 = vunpack.c.l.b16 %v368
        %v469 = vunpack.c.h.b16 %v368
        %v470 = vunpack.c.l.b16 %v369
        %v471 = vunpack.c.h.b16 %v369
        %v472 = vpack.c.b16 %v442, %v440
        %v473 = vpack.c.b16 %v443, %v441
        %v474 = vpack.c.b16 %v446, %v444
        %v475 = vpack.c.b16 %v447, %v445
        %v476 = vpack.c.b16 %v450, %v448
        %v477 = vpack.c.b16 %v451, %v449
        %v478 = vpack.c.b16 %v454, %v452
        %v479 = vpack.c.b16 %v455, %v453
        %v480 = vpack.c.b16 %v458, %v456
        %v481 = vpack.c.b16 %v459, %v457
        %v482 = vpack.c.b16 %v462, %v460
        %v483 = vpack.c.b16 %v463, %v461
        %v484 = vpack.c.b16 %v466, %v464
        %v485 = vpack.c.b16 %v467, %v465
        %v486 = vpack.c.b16 %v470, %v468
        %v487 = vpack.c.b16 %v471, %v469
        %504 = vmatpush.bf16.msra.mxu0 %v486
        %505 = vmatpush.bf16.msra.mxu0 %v484
        %506 = vmatpush.bf16.msra.mxu0 %v482
        %507 = vmatpush.bf16.msra.mxu0 %v480
        %508 = vmatpush.bf16.msra.mxu0 %v478
        %509 = vmatpush.bf16.msra.mxu0 %v476
        %510 = vmatpush.bf16.msra.mxu0 %v474
        %511 = vmatpush.bf16.msra.mxu0 %v472
        %512 = vmatmul.bf16.gmra.mxu0 %v408
        %v513 = vpop.f32.mrf.mxu0
        %v514 = vadd.f32 %v372, %v513
        %v515 = vpop.f32.mrf.mxu0
        %v516 = vadd.f32 %v372, %v515
        %517 = vmatmul.bf16.gmra.mxu0 %v409
        %v518 = vpop.f32.mrf.mxu0
        %v519 = vadd.f32 %v372, %v518
        %v520 = vpop.f32.mrf.mxu0
        %v521 = vadd.f32 %v372, %v520
        %522 = vmatmul.bf16.gmra.mxu0 %v410
        %v523 = vpop.f32.mrf.mxu0
        %v524 = vadd.f32 %v372, %v523
        %v525 = vpop.f32.mrf.mxu0
        %v526 = vadd.f32 %v372, %v525
        %527 = vmatmul.bf16.gmra.mxu0 %v411
        %v528 = vpop.f32.mrf.mxu0
        %v529 = vadd.f32 %v372, %v528
        %v530 = vpop.f32.mrf.mxu0
        %v531 = vadd.f32 %v372, %v530
        %532 = vmatmul.bf16.gmra.mxu0 %v412
        %v533 = vpop.f32.mrf.mxu0
        %v534 = vadd.f32 %v372, %v533
        %v535 = vpop.f32.mrf.mxu0
        %v536 = vadd.f32 %v372, %v535
        %537 = vmatmul.bf16.gmra.mxu0 %v413
        %v538 = vpop.f32.mrf.mxu0
        %v539 = vadd.f32 %v372, %v538
        %v540 = vpop.f32.mrf.mxu0
        %v541 = vadd.f32 %v372, %v540
        %542 = vmatmul.bf16.gmra.mxu0 %v414
        %v543 = vpop.f32.mrf.mxu0
        %v544 = vadd.f32 %v372, %v543
        %v545 = vpop.f32.mrf.mxu0
        %v546 = vadd.f32 %v372, %v545
        %547 = vmatmul.bf16.gmra.mxu0 %v415
        %v548 = vpop.f32.mrf.mxu0
        %v549 = vadd.f32 %v372, %v548
        %v550 = vpop.f32.mrf.mxu0
        %v551 = vadd.f32 %v372, %v550
        %552 = vdwg.mxu0
        %553 = vmatpush.bf16.msra.mxu0 %v487
        %554 = vmatpush.bf16.msra.mxu0 %v485
        %555 = vmatpush.bf16.msra.mxu0 %v483
        %556 = vmatpush.bf16.msra.mxu0 %v481
        %557 = vmatpush.bf16.msra.mxu0 %v479
        %558 = vmatpush.bf16.msra.mxu0 %v477
        %559 = vmatpush.bf16.msra.mxu0 %v475
        %560 = vmatpush.bf16.msra.mxu0 %v473
        %561 = vmatmul.bf16.gmra.mxu0 %v408
        %v562 = vpop.f32.mrf.mxu0
        %v563 = vadd.f32 %v373, %v562
        %v564 = vpop.f32.mrf.mxu0
        %v565 = vadd.f32 %v373, %v564
        %566 = vmatmul.bf16.gmra.mxu0 %v409
        %v567 = vpop.f32.mrf.mxu0
        %v568 = vadd.f32 %v373, %v567
        %v569 = vpop.f32.mrf.mxu0
        %v570 = vadd.f32 %v373, %v569
        %571 = vmatmul.bf16.gmra.mxu0 %v410
        %v572 = vpop.f32.mrf.mxu0
        %v573 = vadd.f32 %v373, %v572
        %v574 = vpop.f32.mrf.mxu0
        %v575 = vadd.f32 %v373, %v574
        %576 = vmatmul.bf16.gmra.mxu0 %v411
        %v577 = vpop.f32.mrf.mxu0
        %v578 = vadd.f32 %v373, %v577
        %v579 = vpop.f32.mrf.mxu0
        %v580 = vadd.f32 %v373, %v579
        %581 = vmatmul.bf16.gmra.mxu0 %v412
        %v582 = vpop.f32.mrf.mxu0
        %v583 = vadd.f32 %v373, %v582
        %v584 = vpop.f32.mrf.mxu0
        %v585 = vadd.f32 %v373, %v584
        %586 = vmatmul.bf16.gmra.mxu0 %v413
        %v587 = vpop.f32.mrf.mxu0
        %v588 = vadd.f32 %v373, %v587
        %v589 = vpop.f32.mrf.mxu0
        %v590 = vadd.f32 %v373, %v589
        %591 = vmatmul.bf16.gmra.mxu0 %v414
        %v592 = vpop.f32.mrf.mxu0
        %v593 = vadd.f32 %v373, %v592
        %v594 = vpop.f32.mrf.mxu0
        %v595 = vadd.f32 %v373, %v594
        %596 = vmatmul.bf16.gmra.mxu0 %v415
        %v597 = vpop.f32.mrf.mxu0
        %v598 = vadd.f32 %v373, %v597
        %v599 = vpop.f32.mrf.mxu0
        %v600 = vadd.f32 %v373, %v599
        %601 = vdwg.mxu0
        %s602 = scalar_lea.vmem [#allocation10], 1
        %v603 = vld [vmem:[%s602] ss:$8 sm:$0x3]
        %s604 = scalar_lea.vmem [#allocation10], 2
        %v605 = vld [vmem:[%s604] ss:$8 sm:$0x3]
        %v606 = vadd.f32 %v514, %v563
        %607 = vadd.xlane.f32.xlu0 %v606
        %v608 = vpop.xlane.xlu0 %607
        %v609 = vadd.f32 %v516, %v565
        %610 = vadd.xlane.f32.xlu0 %v609
        %v611 = vpop.xlane.xlu0 %610
        %v612 = vadd.f32 %v519, %v568
        %613 = vadd.xlane.f32.xlu0 %v612
        %v614 = vpop.xlane.xlu0 %613
        %v615 = vadd.f32 %v521, %v570
        %616 = vadd.xlane.f32.xlu0 %v615
        %v617 = vpop.xlane.xlu0 %616
        %v618 = vadd.f32 %v524, %v573
        %619 = vadd.xlane.f32.xlu0 %v618
        %v620 = vpop.xlane.xlu0 %619
        %v621 = vadd.f32 %v526, %v575
        %622 = vadd.xlane.f32.xlu0 %v621
        %v623 = vpop.xlane.xlu0 %622
        %v624 = vadd.f32 %v529, %v578
        %625 = vadd.xlane.f32.xlu0 %v624
        %v626 = vpop.xlane.xlu0 %625
        %v627 = vadd.f32 %v531, %v580
        %628 = vadd.xlane.f32.xlu0 %v627
        %v629 = vpop.xlane.xlu0 %628
        %v630 = vadd.f32 %v534, %v583
        %631 = vadd.xlane.f32.xlu0 %v630
        %v632 = vpop.xlane.xlu0 %631
        %v633 = vadd.f32 %v536, %v585
        %634 = vadd.xlane.f32.xlu0 %v633
        %v635 = vpop.xlane.xlu0 %634
        %v636 = vadd.f32 %v539, %v588
        %637 = vadd.xlane.f32.xlu0 %v636
        %v638 = vpop.xlane.xlu0 %637
        %v639 = vadd.f32 %v541, %v590
        %640 = vadd.xlane.f32.xlu0 %v639
        %v641 = vpop.xlane.xlu0 %640
        %v642 = vadd.f32 %v544, %v593
        %643 = vadd.xlane.f32.xlu0 %v642
        %v644 = vpop.xlane.xlu0 %643
        %v645 = vadd.f32 %v546, %v595
        %646 = vadd.xlane.f32.xlu0 %v645
        %v647 = vpop.xlane.xlu0 %646
        %v648 = vadd.f32 %v549, %v598
        %649 = vadd.xlane.f32.xlu0 %v648
        %v650 = vpop.xlane.xlu0 %649
        %v651 = vadd.f32 %v551, %v600
        %652 = vadd.xlane.f32.xlu0 %v651
        %v653 = vpop.xlane.xlu0 %652
        %v654 = vrcp.pop 256.0
        %v655 = vmul.f32 256.0, %v654
        %v656 = vsub.f32 1.0, %v655
        %v657 = vmul.f32 %v654, %v656
        %v658 = vadd.f32 %v654, %v657
        %vm659 = vweird.f32 %v654
        %v660 = vsel %vm659, %v654, %v658
        %v661 = vmul.f32 %v608, %v660
        %v662 = vmul.f32 %v611, %v660
        %v663 = vmul.f32 %v614, %v660
        %v664 = vmul.f32 %v617, %v660
        %v665 = vmul.f32 %v620, %v660
        %v666 = vmul.f32 %v623, %v660
        %v667 = vmul.f32 %v626, %v660
        %v668 = vmul.f32 %v629, %v660
        %v669 = vmul.f32 %v632, %v660
        %v670 = vmul.f32 %v635, %v660
        %v671 = vmul.f32 %v638, %v660
        %v672 = vmul.f32 %v641, %v660
        %v673 = vmul.f32 %v644, %v660
        %v674 = vmul.f32 %v647, %v660
        %v675 = vmul.f32 %v650, %v660
        %v676 = vmul.f32 %v653, %v660
        %v677 = vsub.f32 %v514, %v661
        %v678 = vsub.f32 %v563, %v661
        %v679 = vsub.f32 %v516, %v662
        %v680 = vsub.f32 %v565, %v662
        %v681 = vsub.f32 %v519, %v663
        %v682 = vsub.f32 %v568, %v663
        %v683 = vsub.f32 %v521, %v664
        %v684 = vsub.f32 %v570, %v664
        %v685 = vsub.f32 %v524, %v665
        %v686 = vsub.f32 %v573, %v665
        %v687 = vsub.f32 %v526, %v666
        %v688 = vsub.f32 %v575, %v666
        %v689 = vsub.f32 %v529, %v667
        %v690 = vsub.f32 %v578, %v667
        %v691 = vsub.f32 %v531, %v668
        %v692 = vsub.f32 %v580, %v668
        %v693 = vsub.f32 %v534, %v669
        %v694 = vsub.f32 %v583, %v669
        %v695 = vsub.f32 %v536, %v670
        %v696 = vsub.f32 %v585, %v670
        %v697 = vsub.f32 %v539, %v671
        %v698 = vsub.f32 %v588, %v671
        %v699 = vsub.f32 %v541, %v672
        %v700 = vsub.f32 %v590, %v672
        %v701 = vsub.f32 %v544, %v673
        %v702 = vsub.f32 %v593, %v673
        %v703 = vsub.f32 %v546, %v674
        %v704 = vsub.f32 %v595, %v674
        %v705 = vsub.f32 %v549, %v675
        %v706 = vsub.f32 %v598, %v675
        %v707 = vsub.f32 %v551, %v676
        %v708 = vsub.f32 %v600, %v676
        %v709 = vmul.f32 %v677, %v677
        %v710 = vmul.f32 %v678, %v678
        %v711 = vmul.f32 %v679, %v679
        %v712 = vmul.f32 %v680, %v680
        %v713 = vmul.f32 %v681, %v681
        %v714 = vmul.f32 %v682, %v682
        %v715 = vmul.f32 %v683, %v683
        %v716 = vmul.f32 %v684, %v684
        %v717 = vmul.f32 %v685, %v685
        %v718 = vmul.f32 %v686, %v686
        %v719 = vmul.f32 %v687, %v687
        %v720 = vmul.f32 %v688, %v688
        %v721 = vmul.f32 %v689, %v689
        %v722 = vmul.f32 %v690, %v690
        %v723 = vmul.f32 %v691, %v691
        %v724 = vmul.f32 %v692, %v692
        %v725 = vmul.f32 %v693, %v693
        %v726 = vmul.f32 %v694, %v694
        %v727 = vmul.f32 %v695, %v695
        %v728 = vmul.f32 %v696, %v696
        %v729 = vmul.f32 %v697, %v697
        %v730 = vmul.f32 %v698, %v698
        %v731 = vmul.f32 %v699, %v699
        %v732 = vmul.f32 %v700, %v700
        %v733 = vmul.f32 %v701, %v701
        %v734 = vmul.f32 %v702, %v702
        %v735 = vmul.f32 %v703, %v703
        %v736 = vmul.f32 %v704, %v704
        %v737 = vmul.f32 %v705, %v705
        %v738 = vmul.f32 %v706, %v706
        %v739 = vmul.f32 %v707, %v707
        %v740 = vmul.f32 %v708, %v708
        %v741 = vadd.f32 %v709, %v710
        %742 = vadd.xlane.f32.xlu0 %v741
        %v743 = vpop.xlane.xlu0 %742
        %v744 = vadd.f32 %v711, %v712
        %745 = vadd.xlane.f32.xlu0 %v744
        %v746 = vpop.xlane.xlu0 %745
        %v747 = vadd.f32 %v713, %v714
        %748 = vadd.xlane.f32.xlu0 %v747
        %v749 = vpop.xlane.xlu0 %748
        %v750 = vadd.f32 %v715, %v716
        %751 = vadd.xlane.f32.xlu0 %v750
        %v752 = vpop.xlane.xlu0 %751
        %v753 = vadd.f32 %v717, %v718
        %754 = vadd.xlane.f32.xlu0 %v753
        %v755 = vpop.xlane.xlu0 %754
        %v756 = vadd.f32 %v719, %v720
        %757 = vadd.xlane.f32.xlu0 %v756
        %v758 = vpop.xlane.xlu0 %757
        %v759 = vadd.f32 %v721, %v722
        %760 = vadd.xlane.f32.xlu0 %v759
        %v761 = vpop.xlane.xlu0 %760
        %v762 = vadd.f32 %v723, %v724
        %763 = vadd.xlane.f32.xlu0 %v762
        %v764 = vpop.xlane.xlu0 %763
        %v765 = vadd.f32 %v725, %v726
        %766 = vadd.xlane.f32.xlu0 %v765
        %v767 = vpop.xlane.xlu0 %766
        %v768 = vadd.f32 %v727, %v728
        %769 = vadd.xlane.f32.xlu0 %v768
        %v770 = vpop.xlane.xlu0 %769
        %v771 = vadd.f32 %v729, %v730
        %772 = vadd.xlane.f32.xlu0 %v771
        %v773 = vpop.xlane.xlu0 %772
        %v774 = vadd.f32 %v731, %v732
        %775 = vadd.xlane.f32.xlu0 %v774
        %v776 = vpop.xlane.xlu0 %775
        %v777 = vadd.f32 %v733, %v734
        %778 = vadd.xlane.f32.xlu0 %v777
        %v779 = vpop.xlane.xlu0 %778
        %v780 = vadd.f32 %v735, %v736
        %781 = vadd.xlane.f32.xlu0 %v780
        %v782 = vpop.xlane.xlu0 %781
        %v783 = vadd.f32 %v737, %v738
        %784 = vadd.xlane.f32.xlu0 %v783
        %v785 = vpop.xlane.xlu0 %784
        %v786 = vadd.f32 %v739, %v740
        %787 = vadd.xlane.f32.xlu0 %v786
        %v788 = vpop.xlane.xlu0 %787
        %v789 = vmul.f32 %v743, %v660
        %v790 = vmul.f32 %v746, %v660
        %v791 = vmul.f32 %v749, %v660
        %v792 = vmul.f32 %v752, %v660
        %v793 = vmul.f32 %v755, %v660
        %v794 = vmul.f32 %v758, %v660
        %v795 = vmul.f32 %v761, %v660
        %v796 = vmul.f32 %v764, %v660
        %v797 = vmul.f32 %v767, %v660
        %v798 = vmul.f32 %v770, %v660
        %v799 = vmul.f32 %v773, %v660
        %v800 = vmul.f32 %v776, %v660
        %v801 = vmul.f32 %v779, %v660
        %v802 = vmul.f32 %v782, %v660
        %v803 = vmul.f32 %v785, %v660
        %v804 = vmul.f32 %v788, %v660
        %v805 = vadd.f32 %v789, 1e-05
        %v806 = vadd.f32 %v790, 1e-05
        %v807 = vadd.f32 %v791, 1e-05
        %v808 = vadd.f32 %v792, 1e-05
        %v809 = vadd.f32 %v793, 1e-05
        %v810 = vadd.f32 %v794, 1e-05
        %v811 = vadd.f32 %v795, 1e-05
        %v812 = vadd.f32 %v796, 1e-05
        %v813 = vadd.f32 %v797, 1e-05
        %v814 = vadd.f32 %v798, 1e-05
        %v815 = vadd.f32 %v799, 1e-05
        %v816 = vadd.f32 %v800, 1e-05
        %v817 = vadd.f32 %v801, 1e-05
        %v818 = vadd.f32 %v802, 1e-05
        %v819 = vadd.f32 %v803, 1e-05
        %v820 = vadd.f32 %v804, 1e-05
        %v821 = vrsqrt.pop %v805
        %v822 = vmul.f32 %v821, %v805
        %v823 = vmul.f32 %v822, %v821
        %v824 = vmul.f32 0.5, %v823
        %v825 = vsub.f32 1.5, %v824
        %v826 = vmul.f32 %v821, %v825
        %vm827 = vweird.f32 %v805
        %vm828 = vweird.f32 %v821
        %vm829 = vmor %vm827, %vm828
        %v830 = vsel %vm829, %v821, %v826
        %v831 = vrsqrt.pop %v806
        %v832 = vmul.f32 %v831, %v806
        %v833 = vmul.f32 %v832, %v831
        %v834 = vmul.f32 0.5, %v833
        %v835 = vsub.f32 1.5, %v834
        %v836 = vmul.f32 %v831, %v835
        %vm837 = vweird.f32 %v806
        %vm838 = vweird.f32 %v831
        %vm839 = vmor %vm837, %vm838
        %v840 = vsel %vm839, %v831, %v836
        %v841 = vrsqrt.pop %v807
        %v842 = vmul.f32 %v841, %v807
        %v843 = vmul.f32 %v842, %v841
        %v844 = vmul.f32 0.5, %v843
        %v845 = vsub.f32 1.5, %v844
        %v846 = vmul.f32 %v841, %v845
        %vm847 = vweird.f32 %v807
        %vm848 = vweird.f32 %v841
        %vm849 = vmor %vm847, %vm848
        %v850 = vsel %vm849, %v841, %v846
        %v851 = vrsqrt.pop %v808
        %v852 = vmul.f32 %v851, %v808
        %v853 = vmul.f32 %v852, %v851
        %v854 = vmul.f32 0.5, %v853
        %v855 = vsub.f32 1.5, %v854
        %v856 = vmul.f32 %v851, %v855
        %vm857 = vweird.f32 %v808
        %vm858 = vweird.f32 %v851
        %vm859 = vmor %vm857, %vm858
        %v860 = vsel %vm859, %v851, %v856
        %v861 = vrsqrt.pop %v809
        %v862 = vmul.f32 %v861, %v809
        %v863 = vmul.f32 %v862, %v861
        %v864 = vmul.f32 0.5, %v863
        %v865 = vsub.f32 1.5, %v864
        %v866 = vmul.f32 %v861, %v865
        %vm867 = vweird.f32 %v809
        %vm868 = vweird.f32 %v861
        %vm869 = vmor %vm867, %vm868
        %v870 = vsel %vm869, %v861, %v866
        %v871 = vrsqrt.pop %v810
        %v872 = vmul.f32 %v871, %v810
        %v873 = vmul.f32 %v872, %v871
        %v874 = vmul.f32 0.5, %v873
        %v875 = vsub.f32 1.5, %v874
        %v876 = vmul.f32 %v871, %v875
        %vm877 = vweird.f32 %v810
        %vm878 = vweird.f32 %v871
        %vm879 = vmor %vm877, %vm878
        %v880 = vsel %vm879, %v871, %v876
        %v881 = vrsqrt.pop %v811
        %v882 = vmul.f32 %v881, %v811
        %v883 = vmul.f32 %v882, %v881
        %v884 = vmul.f32 0.5, %v883
        %v885 = vsub.f32 1.5, %v884
        %v886 = vmul.f32 %v881, %v885
        %vm887 = vweird.f32 %v811
        %vm888 = vweird.f32 %v881
        %vm889 = vmor %vm887, %vm888
        %v890 = vsel %vm889, %v881, %v886
        %v891 = vrsqrt.pop %v812
        %v892 = vmul.f32 %v891, %v812
        %v893 = vmul.f32 %v892, %v891
        %v894 = vmul.f32 0.5, %v893
        %v895 = vsub.f32 1.5, %v894
        %v896 = vmul.f32 %v891, %v895
        %vm897 = vweird.f32 %v812
        %vm898 = vweird.f32 %v891
        %vm899 = vmor %vm897, %vm898
        %v900 = vsel %vm899, %v891, %v896
        %v901 = vrsqrt.pop %v813
        %v902 = vmul.f32 %v901, %v813
        %v903 = vmul.f32 %v902, %v901
        %v904 = vmul.f32 0.5, %v903
        %v905 = vsub.f32 1.5, %v904
        %v906 = vmul.f32 %v901, %v905
        %vm907 = vweird.f32 %v813
        %vm908 = vweird.f32 %v901
        %vm909 = vmor %vm907, %vm908
        %v910 = vsel %vm909, %v901, %v906
        %v911 = vrsqrt.pop %v814
        %v912 = vmul.f32 %v911, %v814
        %v913 = vmul.f32 %v912, %v911
        %v914 = vmul.f32 0.5, %v913
        %v915 = vsub.f32 1.5, %v914
        %v916 = vmul.f32 %v911, %v915
        %vm917 = vweird.f32 %v814
        %vm918 = vweird.f32 %v911
        %vm919 = vmor %vm917, %vm918
        %v920 = vsel %vm919, %v911, %v916
        %v921 = vrsqrt.pop %v815
        %v922 = vmul.f32 %v921, %v815
        %v923 = vmul.f32 %v922, %v921
        %v924 = vmul.f32 0.5, %v923
        %v925 = vsub.f32 1.5, %v924
        %v926 = vmul.f32 %v921, %v925
        %vm927 = vweird.f32 %v815
        %vm928 = vweird.f32 %v921
        %vm929 = vmor %vm927, %vm928
        %v930 = vsel %vm929, %v921, %v926
        %v931 = vrsqrt.pop %v816
        %v932 = vmul.f32 %v931, %v816
        %v933 = vmul.f32 %v932, %v931
        %v934 = vmul.f32 0.5, %v933
        %v935 = vsub.f32 1.5, %v934
        %v936 = vmul.f32 %v931, %v935
        %vm937 = vweird.f32 %v816
        %vm938 = vweird.f32 %v931
        %vm939 = vmor %vm937, %vm938
        %v940 = vsel %vm939, %v931, %v936
        %v941 = vrsqrt.pop %v817
        %v942 = vmul.f32 %v941, %v817
        %v943 = vmul.f32 %v942, %v941
        %v944 = vmul.f32 0.5, %v943
        %v945 = vsub.f32 1.5, %v944
        %v946 = vmul.f32 %v941, %v945
        %vm947 = vweird.f32 %v817
        %vm948 = vweird.f32 %v941
        %vm949 = vmor %vm947, %vm948
        %v950 = vsel %vm949, %v941, %v946
        %v951 = vrsqrt.pop %v818
        %v952 = vmul.f32 %v951, %v818
        %v953 = vmul.f32 %v952, %v951
        %v954 = vmul.f32 0.5, %v953
        %v955 = vsub.f32 1.5, %v954
        %v956 = vmul.f32 %v951, %v955
        %vm957 = vweird.f32 %v818
        %vm958 = vweird.f32 %v951
        %vm959 = vmor %vm957, %vm958
        %v960 = vsel %vm959, %v951, %v956
        %v961 = vrsqrt.pop %v819
        %v962 = vmul.f32 %v961, %v819
        %v963 = vmul.f32 %v962, %v961
        %v964 = vmul.f32 0.5, %v963
        %v965 = vsub.f32 1.5, %v964
        %v966 = vmul.f32 %v961, %v965
        %vm967 = vweird.f32 %v819
        %vm968 = vweird.f32 %v961
        %vm969 = vmor %vm967, %vm968
        %v970 = vsel %vm969, %v961, %v966
        %v971 = vrsqrt.pop %v820
        %v972 = vmul.f32 %v971, %v820
        %v973 = vmul.f32 %v972, %v971
        %v974 = vmul.f32 0.5, %v973
        %v975 = vsub.f32 1.5, %v974
        %v976 = vmul.f32 %v971, %v975
        %vm977 = vweird.f32 %v820
        %vm978 = vweird.f32 %v971
        %vm979 = vmor %vm977, %vm978
        %v980 = vsel %vm979, %v971, %v976
        %v981 = vmul.f32 %v677, %v830
        %v982 = vmul.f32 %v678, %v830
        %v983 = vmul.f32 %v679, %v840
        %v984 = vmul.f32 %v680, %v840
        %v985 = vmul.f32 %v681, %v850
        %v986 = vmul.f32 %v682, %v850
        %v987 = vmul.f32 %v683, %v860
        %v988 = vmul.f32 %v684, %v860
        %v989 = vmul.f32 %v685, %v870
        %v990 = vmul.f32 %v686, %v870
        %v991 = vmul.f32 %v687, %v880
        %v992 = vmul.f32 %v688, %v880
        %v993 = vmul.f32 %v689, %v890
        %v994 = vmul.f32 %v690, %v890
        %v995 = vmul.f32 %v691, %v900
        %v996 = vmul.f32 %v692, %v900
        %v997 = vmul.f32 %v693, %v910
        %v998 = vmul.f32 %v694, %v910
        %v999 = vmul.f32 %v695, %v920
        %v1000 = vmul.f32 %v696, %v920
        %v1001 = vmul.f32 %v697, %v930
        %v1002 = vmul.f32 %v698, %v930
        %v1003 = vmul.f32 %v699, %v940
        %v1004 = vmul.f32 %v700, %v940
        %v1005 = vmul.f32 %v701, %v950
        %v1006 = vmul.f32 %v702, %v950
        %v1007 = vmul.f32 %v703, %v960
        %v1008 = vmul.f32 %v704, %v960
        %v1009 = vmul.f32 %v705, %v970
        %v1010 = vmul.f32 %v706, %v970
        %v1011 = vmul.f32 %v707, %v980
        %v1012 = vmul.f32 %v708, %v980
        %v1014 = vperm.slane %v603, 0
        %v1015 = vperm.slane %v603, 1
        %v1018 = vmul.f32 %v981, %v1014
        %v1019 = vmul.f32 %v982, %v1015
        %v1020 = vmul.f32 %v983, %v1014
        %v1021 = vmul.f32 %v984, %v1015
        %v1022 = vmul.f32 %v985, %v1014
        %v1023 = vmul.f32 %v986, %v1015
        %v1024 = vmul.f32 %v987, %v1014
        %v1025 = vmul.f32 %v988, %v1015
        %v1026 = vmul.f32 %v989, %v1014
        %v1027 = vmul.f32 %v990, %v1015
        %v1028 = vmul.f32 %v991, %v1014
        %v1029 = vmul.f32 %v992, %v1015
        %v1030 = vmul.f32 %v993, %v1014
        %v1031 = vmul.f32 %v994, %v1015
        %v1032 = vmul.f32 %v995, %v1014
        %v1033 = vmul.f32 %v996, %v1015
        %v1034 = vmul.f32 %v997, %v1014
        %v1035 = vmul.f32 %v998, %v1015
        %v1036 = vmul.f32 %v999, %v1014
        %v1037 = vmul.f32 %v1000, %v1015
        %v1038 = vmul.f32 %v1001, %v1014
        %v1039 = vmul.f32 %v1002, %v1015
        %v1040 = vmul.f32 %v1003, %v1014
        %v1041 = vmul.f32 %v1004, %v1015
        %v1042 = vmul.f32 %v1005, %v1014
        %v1043 = vmul.f32 %v1006, %v1015
        %v1044 = vmul.f32 %v1007, %v1014
        %v1045 = vmul.f32 %v1008, %v1015
        %v1046 = vmul.f32 %v1009, %v1014
        %v1047 = vmul.f32 %v1010, %v1015
        %v1048 = vmul.f32 %v1011, %v1014
        %v1049 = vmul.f32 %v1012, %v1015
        %v1051 = vperm.slane %v605, 0
        %v1052 = vperm.slane %v605, 1
        %v1055 = vadd.f32 %v1018, %v1051
        %v1056 = vadd.f32 %v1019, %v1052
        %v1057 = vadd.f32 %v1020, %v1051
        %v1058 = vadd.f32 %v1021, %v1052
        %v1059 = vadd.f32 %v1022, %v1051
        %v1060 = vadd.f32 %v1023, %v1052
        %v1061 = vadd.f32 %v1024, %v1051
        %v1062 = vadd.f32 %v1025, %v1052
        %v1063 = vadd.f32 %v1026, %v1051
        %v1064 = vadd.f32 %v1027, %v1052
        %v1065 = vadd.f32 %v1028, %v1051
        %v1066 = vadd.f32 %v1029, %v1052
        %v1067 = vadd.f32 %v1030, %v1051
        %v1068 = vadd.f32 %v1031, %v1052
        %v1069 = vadd.f32 %v1032, %v1051
        %v1070 = vadd.f32 %v1033, %v1052
        %v1071 = vadd.f32 %v1034, %v1051
        %v1072 = vadd.f32 %v1035, %v1052
        %v1073 = vadd.f32 %v1036, %v1051
        %v1074 = vadd.f32 %v1037, %v1052
        %v1075 = vadd.f32 %v1038, %v1051
        %v1076 = vadd.f32 %v1039, %v1052
        %v1077 = vadd.f32 %v1040, %v1051
        %v1078 = vadd.f32 %v1041, %v1052
        %v1079 = vadd.f32 %v1042, %v1051
        %v1080 = vadd.f32 %v1043, %v1052
        %v1081 = vadd.f32 %v1044, %v1051
        %v1082 = vadd.f32 %v1045, %v1052
        %v1083 = vadd.f32 %v1046, %v1051
        %v1084 = vadd.f32 %v1047, %v1052
        %v1085 = vadd.f32 %v1048, %v1051
        %v1086 = vadd.f32 %v1049, %v1052
        %vm1087 = vcmp.ge.f32.partialorder %v1055, 0.0
        %vm1088 = vcmp.ge.f32.partialorder %v1056, 0.0
        %vm1089 = vcmp.ge.f32.partialorder %v1057, 0.0
        %vm1090 = vcmp.ge.f32.partialorder %v1058, 0.0
        %vm1091 = vcmp.ge.f32.partialorder %v1059, 0.0
        %vm1092 = vcmp.ge.f32.partialorder %v1060, 0.0
        %vm1093 = vcmp.ge.f32.partialorder %v1061, 0.0
        %vm1094 = vcmp.ge.f32.partialorder %v1062, 0.0
        %vm1095 = vcmp.ge.f32.partialorder %v1063, 0.0
        %vm1096 = vcmp.ge.f32.partialorder %v1064, 0.0
        %vm1097 = vcmp.ge.f32.partialorder %v1065, 0.0
        %vm1098 = vcmp.ge.f32.partialorder %v1066, 0.0
        %vm1099 = vcmp.ge.f32.partialorder %v1067, 0.0
        %vm1100 = vcmp.ge.f32.partialorder %v1068, 0.0
        %vm1101 = vcmp.ge.f32.partialorder %v1069, 0.0
        %vm1102 = vcmp.ge.f32.partialorder %v1070, 0.0
        %vm1103 = vcmp.ge.f32.partialorder %v1071, 0.0
        %vm1104 = vcmp.ge.f32.partialorder %v1072, 0.0
        %vm1105 = vcmp.ge.f32.partialorder %v1073, 0.0
        %vm1106 = vcmp.ge.f32.partialorder %v1074, 0.0
        %vm1107 = vcmp.ge.f32.partialorder %v1075, 0.0
        %vm1108 = vcmp.ge.f32.partialorder %v1076, 0.0
        %vm1109 = vcmp.ge.f32.partialorder %v1077, 0.0
        %vm1110 = vcmp.ge.f32.partialorder %v1078, 0.0
        %vm1111 = vcmp.ge.f32.partialorder %v1079, 0.0
        %vm1112 = vcmp.ge.f32.partialorder %v1080, 0.0
        %vm1113 = vcmp.ge.f32.partialorder %v1081, 0.0
        %vm1114 = vcmp.ge.f32.partialorder %v1082, 0.0
        %vm1115 = vcmp.ge.f32.partialorder %v1083, 0.0
        %vm1116 = vcmp.ge.f32.partialorder %v1084, 0.0
        %vm1117 = vcmp.ge.f32.partialorder %v1085, 0.0
        %vm1118 = vcmp.ge.f32.partialorder %v1086, 0.0
        %v1119 = vmul.f32 %v1055, 0.01
        %v1120 = vmul.f32 %v1056, 0.01
        %v1121 = vmul.f32 %v1057, 0.01
        %v1122 = vmul.f32 %v1058, 0.01
        %v1123 = vmul.f32 %v1059, 0.01
        %v1124 = vmul.f32 %v1060, 0.01
        %v1125 = vmul.f32 %v1061, 0.01
        %v1126 = vmul.f32 %v1062, 0.01
        %v1127 = vmul.f32 %v1063, 0.01
        %v1128 = vmul.f32 %v1064, 0.01
        %v1129 = vmul.f32 %v1065, 0.01
        %v1130 = vmul.f32 %v1066, 0.01
        %v1131 = vmul.f32 %v1067, 0.01
        %v1132 = vmul.f32 %v1068, 0.01
        %v1133 = vmul.f32 %v1069, 0.01
        %v1134 = vmul.f32 %v1070, 0.01
        %v1135 = vmul.f32 %v1071, 0.01
        %v1136 = vmul.f32 %v1072, 0.01
        %v1137 = vmul.f32 %v1073, 0.01
        %v1138 = vmul.f32 %v1074, 0.01
        %v1139 = vmul.f32 %v1075, 0.01
        %v1140 = vmul.f32 %v1076, 0.01
        %v1141 = vmul.f32 %v1077, 0.01
        %v1142 = vmul.f32 %v1078, 0.01
        %v1143 = vmul.f32 %v1079, 0.01
        %v1144 = vmul.f32 %v1080, 0.01
        %v1145 = vmul.f32 %v1081, 0.01
        %v1146 = vmul.f32 %v1082, 0.01
        %v1147 = vmul.f32 %v1083, 0.01
        %v1148 = vmul.f32 %v1084, 0.01
        %v1149 = vmul.f32 %v1085, 0.01
        %v1150 = vmul.f32 %v1086, 0.01
        %v1151 = vsel %vm1087, %v1055, %v1119
        %v1152 = vsel %vm1088, %v1056, %v1120
        %v1153 = vsel %vm1089, %v1057, %v1121
        %v1154 = vsel %vm1090, %v1058, %v1122
        %v1155 = vsel %vm1091, %v1059, %v1123
        %v1156 = vsel %vm1092, %v1060, %v1124
        %v1157 = vsel %vm1093, %v1061, %v1125
        %v1158 = vsel %vm1094, %v1062, %v1126
        %v1159 = vsel %vm1095, %v1063, %v1127
        %v1160 = vsel %vm1096, %v1064, %v1128
        %v1161 = vsel %vm1097, %v1065, %v1129
        %v1162 = vsel %vm1098, %v1066, %v1130
        %v1163 = vsel %vm1099, %v1067, %v1131
        %v1164 = vsel %vm1100, %v1068, %v1132
        %v1165 = vsel %vm1101, %v1069, %v1133
        %v1166 = vsel %vm1102, %v1070, %v1134
        %v1167 = vsel %vm1103, %v1071, %v1135
        %v1168 = vsel %vm1104, %v1072, %v1136
        %v1169 = vsel %vm1105, %v1073, %v1137
        %v1170 = vsel %vm1106, %v1074, %v1138
        %v1171 = vsel %vm1107, %v1075, %v1139
        %v1172 = vsel %vm1108, %v1076, %v1140
        %v1173 = vsel %vm1109, %v1077, %v1141
        %v1174 = vsel %vm1110, %v1078, %v1142
        %v1175 = vsel %vm1111, %v1079, %v1143
        %v1176 = vsel %vm1112, %v1080, %v1144
        %v1177 = vsel %vm1113, %v1081, %v1145
        %v1178 = vsel %vm1114, %v1082, %v1146
        %v1179 = vsel %vm1115, %v1083, %v1147
        %v1180 = vsel %vm1116, %v1084, %v1148
        %v1181 = vsel %vm1117, %v1085, %v1149
        %v1182 = vsel %vm1118, %v1086, %v1150
        %v1183 = vpack.c.bf16 %v1153, %v1151
        %v1184 = vpack.c.bf16 %v1154, %v1152
        %v1185 = vpack.c.bf16 %v1157, %v1155
        %v1186 = vpack.c.bf16 %v1158, %v1156
        %v1187 = vpack.c.bf16 %v1161, %v1159
        %v1188 = vpack.c.bf16 %v1162, %v1160
        %v1189 = vpack.c.bf16 %v1165, %v1163
        %v1190 = vpack.c.bf16 %v1166, %v1164
        %v1191 = vpack.c.bf16 %v1169, %v1167
        %v1192 = vpack.c.bf16 %v1170, %v1168
        %v1193 = vpack.c.bf16 %v1173, %v1171
        %v1194 = vpack.c.bf16 %v1174, %v1172
        %v1195 = vpack.c.bf16 %v1177, %v1175
        %v1196 = vpack.c.bf16 %v1178, %v1176
        %v1197 = vpack.c.bf16 %v1181, %v1179
        %v1198 = vpack.c.bf16 %v1182, %v1180
        %v1199 = vld [vmem:[#allocation7] sm:$0xff]
        %v1200 = vld [vmem:[#allocation7 + $0x8] sm:$0xff]
        %v1201 = vld [vmem:[#allocation7 + $0x10] sm:$0xff]
        %v1202 = vld [vmem:[#allocation7 + $0x18] sm:$0xff]
        %v1203 = vld [vmem:[#allocation7 + $0x20] sm:$0xff]
        %v1204 = vld [vmem:[#allocation7 + $0x28] sm:$0xff]
        %v1205 = vld [vmem:[#allocation7 + $0x30] sm:$0xff]
        %v1206 = vld [vmem:[#allocation7 + $0x38] sm:$0xff]
        %v1207 = vld [vmem:[#allocation7 + $0x40] sm:$0xff]
        %v1208 = vld [vmem:[#allocation7 + $0x48] sm:$0xff]
        %v1209 = vld [vmem:[#allocation7 + $0x50] sm:$0xff]
        %v1210 = vld [vmem:[#allocation7 + $0x58] sm:$0xff]
        %v1211 = vld [vmem:[#allocation7 + $0x60] sm:$0xff]
        %v1212 = vld [vmem:[#allocation7 + $0x68] sm:$0xff]
        %v1213 = vld [vmem:[#allocation7 + $0x70] sm:$0xff]
        %v1214 = vld [vmem:[#allocation7 + $0x78] sm:$0xff]
        %v1215 = vld [vmem:[#allocation7 + $0x80] sm:$0xff]
        %v1216 = vld [vmem:[#allocation7 + $0x88] sm:$0xff]
        %v1217 = vld [vmem:[#allocation7 + $0x90] sm:$0xff]
        %v1218 = vld [vmem:[#allocation7 + $0x98] sm:$0xff]
        %v1219 = vld [vmem:[#allocation7 + $0xa0] sm:$0xff]
        %v1220 = vld [vmem:[#allocation7 + $0xa8] sm:$0xff]
        %v1221 = vld [vmem:[#allocation7 + $0xb0] sm:$0xff]
        %v1222 = vld [vmem:[#allocation7 + $0xb8] sm:$0xff]
        %v1223 = vld [vmem:[#allocation7 + $0xc0] sm:$0xff]
        %v1224 = vld [vmem:[#allocation7 + $0xc8] sm:$0xff]
        %v1225 = vld [vmem:[#allocation7 + $0xd0] sm:$0xff]
        %v1226 = vld [vmem:[#allocation7 + $0xd8] sm:$0xff]
        %v1227 = vld [vmem:[#allocation7 + $0xe0] sm:$0xff]
        %v1228 = vld [vmem:[#allocation7 + $0xe8] sm:$0xff]
        %v1229 = vld [vmem:[#allocation7 + $0xf0] sm:$0xff]
        %v1230 = vld [vmem:[#allocation7 + $0xf8] sm:$0xff]
        %s1231 = scalar_lea.vmem [#allocation10], 3
        %v1232 = vld [vmem:[%s1231] ss:$8 sm:$0x3]
        %v1234 = vperm.slane %v1232, 0
        %v1235 = vperm.slane %v1232, 1
        %v1270 = vunpack.c.l.b16 %v1199
        %v1271 = vunpack.c.h.b16 %v1199
        %v1272 = vunpack.c.l.b16 %v1200
        %v1273 = vunpack.c.h.b16 %v1200
        %v1274 = vunpack.c.l.b16 %v1201
        %v1275 = vunpack.c.h.b16 %v1201
        %v1276 = vunpack.c.l.b16 %v1202
        %v1277 = vunpack.c.h.b16 %v1202
        %v1278 = vunpack.c.l.b16 %v1203
        %v1279 = vunpack.c.h.b16 %v1203
        %v1280 = vunpack.c.l.b16 %v1204
        %v1281 = vunpack.c.h.b16 %v1204
        %v1282 = vunpack.c.l.b16 %v1205
        %v1283 = vunpack.c.h.b16 %v1205
        %v1284 = vunpack.c.l.b16 %v1206
        %v1285 = vunpack.c.h.b16 %v1206
        %v1286 = vunpack.c.l.b16 %v1207
        %v1287 = vunpack.c.h.b16 %v1207
        %v1288 = vunpack.c.l.b16 %v1208
        %v1289 = vunpack.c.h.b16 %v1208
        %v1290 = vunpack.c.l.b16 %v1209
        %v1291 = vunpack.c.h.b16 %v1209
        %v1292 = vunpack.c.l.b16 %v1210
        %v1293 = vunpack.c.h.b16 %v1210
        %v1294 = vunpack.c.l.b16 %v1211
        %v1295 = vunpack.c.h.b16 %v1211
        %v1296 = vunpack.c.l.b16 %v1212
        %v1297 = vunpack.c.h.b16 %v1212
        %v1298 = vunpack.c.l.b16 %v1213
        %v1299 = vunpack.c.h.b16 %v1213
        %v1300 = vunpack.c.l.b16 %v1214
        %v1301 = vunpack.c.h.b16 %v1214
        %v1302 = vunpack.c.l.b16 %v1215
        %v1303 = vunpack.c.h.b16 %v1215
        %v1304 = vunpack.c.l.b16 %v1216
        %v1305 = vunpack.c.h.b16 %v1216
        %v1306 = vunpack.c.l.b16 %v1217
        %v1307 = vunpack.c.h.b16 %v1217
        %v1308 = vunpack.c.l.b16 %v1218
        %v1309 = vunpack.c.h.b16 %v1218
        %v1310 = vunpack.c.l.b16 %v1219
        %v1311 = vunpack.c.h.b16 %v1219
        %v1312 = vunpack.c.l.b16 %v1220
        %v1313 = vunpack.c.h.b16 %v1220
        %v1314 = vunpack.c.l.b16 %v1221
        %v1315 = vunpack.c.h.b16 %v1221
        %v1316 = vunpack.c.l.b16 %v1222
        %v1317 = vunpack.c.h.b16 %v1222
        %v1318 = vunpack.c.l.b16 %v1223
        %v1319 = vunpack.c.h.b16 %v1223
        %v1320 = vunpack.c.l.b16 %v1224
        %v1321 = vunpack.c.h.b16 %v1224
        %v1322 = vunpack.c.l.b16 %v1225
        %v1323 = vunpack.c.h.b16 %v1225
        %v1324 = vunpack.c.l.b16 %v1226
        %v1325 = vunpack.c.h.b16 %v1226
        %v1326 = vunpack.c.l.b16 %v1227
        %v1327 = vunpack.c.h.b16 %v1227
        %v1328 = vunpack.c.l.b16 %v1228
        %v1329 = vunpack.c.h.b16 %v1228
        %v1330 = vunpack.c.l.b16 %v1229
        %v1331 = vunpack.c.h.b16 %v1229
        %v1332 = vunpack.c.l.b16 %v1230
        %v1333 = vunpack.c.h.b16 %v1230
        %v1334 = vpack.c.b16 %v1272, %v1270
        %v1335 = vpack.c.b16 %v1273, %v1271
        %v1336 = vpack.c.b16 %v1276, %v1274
        %v1337 = vpack.c.b16 %v1277, %v1275
        %v1338 = vpack.c.b16 %v1280, %v1278
        %v1339 = vpack.c.b16 %v1281, %v1279
        %v1340 = vpack.c.b16 %v1284, %v1282
        %v1341 = vpack.c.b16 %v1285, %v1283
        %v1342 = vpack.c.b16 %v1288, %v1286
        %v1343 = vpack.c.b16 %v1289, %v1287
        %v1344 = vpack.c.b16 %v1292, %v1290
        %v1345 = vpack.c.b16 %v1293, %v1291
        %v1346 = vpack.c.b16 %v1296, %v1294
        %v1347 = vpack.c.b16 %v1297, %v1295
        %v1348 = vpack.c.b16 %v1300, %v1298
        %v1349 = vpack.c.b16 %v1301, %v1299
        %v1350 = vpack.c.b16 %v1304, %v1302
        %v1351 = vpack.c.b16 %v1305, %v1303
        %v1352 = vpack.c.b16 %v1308, %v1306
        %v1353 = vpack.c.b16 %v1309, %v1307
        %v1354 = vpack.c.b16 %v1312, %v1310
        %v1355 = vpack.c.b16 %v1313, %v1311
        %v1356 = vpack.c.b16 %v1316, %v1314
        %v1357 = vpack.c.b16 %v1317, %v1315
        %v1358 = vpack.c.b16 %v1320, %v1318
        %v1359 = vpack.c.b16 %v1321, %v1319
        %v1360 = vpack.c.b16 %v1324, %v1322
        %v1361 = vpack.c.b16 %v1325, %v1323
        %v1362 = vpack.c.b16 %v1328, %v1326
        %v1363 = vpack.c.b16 %v1329, %v1327
        %v1364 = vpack.c.b16 %v1332, %v1330
        %v1365 = vpack.c.b16 %v1333, %v1331
        %1398 = vmatpush.bf16.msra.mxu0 %v1348
        %1399 = vmatpush.bf16.msra.mxu0 %v1346
        %1400 = vmatpush.bf16.msra.mxu0 %v1344
        %1401 = vmatpush.bf16.msra.mxu0 %v1342
        %1402 = vmatpush.bf16.msra.mxu0 %v1340
        %1403 = vmatpush.bf16.msra.mxu0 %v1338
        %1404 = vmatpush.bf16.msra.mxu0 %v1336
        %1405 = vmatpush.bf16.msra.mxu0 %v1334
        %1406 = vmatmul.bf16.gmra.mxu0 %v1183
        %v1407 = vpop.f32.mrf.mxu0
        %v1408 = vadd.f32 %v1234, %v1407
        %v1409 = vpop.f32.mrf.mxu0
        %v1410 = vadd.f32 %v1234, %v1409
        %1411 = vmatmul.bf16.gmra.mxu0 %v1185
        %v1412 = vpop.f32.mrf.mxu0
        %v1413 = vadd.f32 %v1234, %v1412
        %v1414 = vpop.f32.mrf.mxu0
        %v1415 = vadd.f32 %v1234, %v1414
        %1416 = vmatmul.bf16.gmra.mxu0 %v1187
        %v1417 = vpop.f32.mrf.mxu0
        %v1418 = vadd.f32 %v1234, %v1417
        %v1419 = vpop.f32.mrf.mxu0
        %v1420 = vadd.f32 %v1234, %v1419
        %1421 = vmatmul.bf16.gmra.mxu0 %v1189
        %v1422 = vpop.f32.mrf.mxu0
        %v1423 = vadd.f32 %v1234, %v1422
        %v1424 = vpop.f32.mrf.mxu0
        %v1425 = vadd.f32 %v1234, %v1424
        %1426 = vmatmul.bf16.gmra.mxu0 %v1191
        %v1427 = vpop.f32.mrf.mxu0
        %v1428 = vadd.f32 %v1234, %v1427
        %v1429 = vpop.f32.mrf.mxu0
        %v1430 = vadd.f32 %v1234, %v1429
        %1431 = vmatmul.bf16.gmra.mxu0 %v1193
        %v1432 = vpop.f32.mrf.mxu0
        %v1433 = vadd.f32 %v1234, %v1432
        %v1434 = vpop.f32.mrf.mxu0
        %v1435 = vadd.f32 %v1234, %v1434
        %1436 = vmatmul.bf16.gmra.mxu0 %v1195
        %v1437 = vpop.f32.mrf.mxu0
        %v1438 = vadd.f32 %v1234, %v1437
        %v1439 = vpop.f32.mrf.mxu0
        %v1440 = vadd.f32 %v1234, %v1439
        %1441 = vmatmul.bf16.gmra.mxu0 %v1197
        %v1442 = vpop.f32.mrf.mxu0
        %v1443 = vadd.f32 %v1234, %v1442
        %v1444 = vpop.f32.mrf.mxu0
        %v1445 = vadd.f32 %v1234, %v1444
        %1446 = vdwg.mxu0
        %1447 = vmatpush.bf16.msra.mxu0 %v1364
        %1448 = vmatpush.bf16.msra.mxu0 %v1362
        %1449 = vmatpush.bf16.msra.mxu0 %v1360
        %1450 = vmatpush.bf16.msra.mxu0 %v1358
        %1451 = vmatpush.bf16.msra.mxu0 %v1356
        %1452 = vmatpush.bf16.msra.mxu0 %v1354
        %1453 = vmatpush.bf16.msra.mxu0 %v1352
        %1454 = vmatpush.bf16.msra.mxu0 %v1350
        %1455 = vmatmul.bf16.gmra.mxu0 %v1184
        %v1456 = vpop.f32.mrf.mxu0
        %v1457 = vadd.f32 %v1408, %v1456
        %v1458 = vpop.f32.mrf.mxu0
        %v1459 = vadd.f32 %v1410, %v1458
        %1460 = vmatmul.bf16.gmra.mxu0 %v1186
        %v1461 = vpop.f32.mrf.mxu0
        %v1462 = vadd.f32 %v1413, %v1461
        %v1463 = vpop.f32.mrf.mxu0
        %v1464 = vadd.f32 %v1415, %v1463
        %1465 = vmatmul.bf16.gmra.mxu0 %v1188
        %v1466 = vpop.f32.mrf.mxu0
        %v1467 = vadd.f32 %v1418, %v1466
        %v1468 = vpop.f32.mrf.mxu0
        %v1469 = vadd.f32 %v1420, %v1468
        %1470 = vmatmul.bf16.gmra.mxu0 %v1190
        %v1471 = vpop.f32.mrf.mxu0
        %v1472 = vadd.f32 %v1423, %v1471
        %v1473 = vpop.f32.mrf.mxu0
        %v1474 = vadd.f32 %v1425, %v1473
        %1475 = vmatmul.bf16.gmra.mxu0 %v1192
        %v1476 = vpop.f32.mrf.mxu0
        %v1477 = vadd.f32 %v1428, %v1476
        %v1478 = vpop.f32.mrf.mxu0
        %v1479 = vadd.f32 %v1430, %v1478
        %1480 = vmatmul.bf16.gmra.mxu0 %v1194
        %v1481 = vpop.f32.mrf.mxu0
        %v1482 = vadd.f32 %v1433, %v1481
        %v1483 = vpop.f32.mrf.mxu0
        %v1484 = vadd.f32 %v1435, %v1483
        %1485 = vmatmul.bf16.gmra.mxu0 %v1196
        %v1486 = vpop.f32.mrf.mxu0
        %v1487 = vadd.f32 %v1438, %v1486
        %v1488 = vpop.f32.mrf.mxu0
        %v1489 = vadd.f32 %v1440, %v1488
        %1490 = vmatmul.bf16.gmra.mxu0 %v1198
        %v1491 = vpop.f32.mrf.mxu0
        %v1492 = vadd.f32 %v1443, %v1491
        %v1493 = vpop.f32.mrf.mxu0
        %v1494 = vadd.f32 %v1445, %v1493
        %1495 = vdwg.mxu0
        %1496 = vmatpush.bf16.msra.mxu0 %v1349
        %1497 = vmatpush.bf16.msra.mxu0 %v1347
        %1498 = vmatpush.bf16.msra.mxu0 %v1345
        %1499 = vmatpush.bf16.msra.mxu0 %v1343
        %1500 = vmatpush.bf16.msra.mxu0 %v1341
        %1501 = vmatpush.bf16.msra.mxu0 %v1339
        %1502 = vmatpush.bf16.msra.mxu0 %v1337
        %1503 = vmatpush.bf16.msra.mxu0 %v1335
        %1504 = vmatmul.bf16.gmra.mxu0 %v1183
        %v1505 = vpop.f32.mrf.mxu0
        %v1506 = vadd.f32 %v1235, %v1505
        %v1507 = vpop.f32.mrf.mxu0
        %v1508 = vadd.f32 %v1235, %v1507
        %1509 = vmatmul.bf16.gmra.mxu0 %v1185
        %v1510 = vpop.f32.mrf.mxu0
        %v1511 = vadd.f32 %v1235, %v1510
        %v1512 = vpop.f32.mrf.mxu0
        %v1513 = vadd.f32 %v1235, %v1512
        %1514 = vmatmul.bf16.gmra.mxu0 %v1187
        %v1515 = vpop.f32.mrf.mxu0
        %v1516 = vadd.f32 %v1235, %v1515
        %v1517 = vpop.f32.mrf.mxu0
        %v1518 = vadd.f32 %v1235, %v1517
        %1519 = vmatmul.bf16.gmra.mxu0 %v1189
        %v1520 = vpop.f32.mrf.mxu0
        %v1521 = vadd.f32 %v1235, %v1520
        %v1522 = vpop.f32.mrf.mxu0
        %v1523 = vadd.f32 %v1235, %v1522
        %1524 = vmatmul.bf16.gmra.mxu0 %v1191
        %v1525 = vpop.f32.mrf.mxu0
        %v1526 = vadd.f32 %v1235, %v1525
        %v1527 = vpop.f32.mrf.mxu0
        %v1528 = vadd.f32 %v1235, %v1527
        %1529 = vmatmul.bf16.gmra.mxu0 %v1193
        %v1530 = vpop.f32.mrf.mxu0
        %v1531 = vadd.f32 %v1235, %v1530
        %v1532 = vpop.f32.mrf.mxu0
        %v1533 = vadd.f32 %v1235, %v1532
        %1534 = vmatmul.bf16.gmra.mxu0 %v1195
        %v1535 = vpop.f32.mrf.mxu0
        %v1536 = vadd.f32 %v1235, %v1535
        %v1537 = vpop.f32.mrf.mxu0
        %v1538 = vadd.f32 %v1235, %v1537
        %1539 = vmatmul.bf16.gmra.mxu0 %v1197
        %v1540 = vpop.f32.mrf.mxu0
        %v1541 = vadd.f32 %v1235, %v1540
        %v1542 = vpop.f32.mrf.mxu0
        %v1543 = vadd.f32 %v1235, %v1542
        %1544 = vdwg.mxu0
        %1545 = vmatpush.bf16.msra.mxu0 %v1365
        %1546 = vmatpush.bf16.msra.mxu0 %v1363
        %1547 = vmatpush.bf16.msra.mxu0 %v1361
        %1548 = vmatpush.bf16.msra.mxu0 %v1359
        %1549 = vmatpush.bf16.msra.mxu0 %v1357
        %1550 = vmatpush.bf16.msra.mxu0 %v1355
        %1551 = vmatpush.bf16.msra.mxu0 %v1353
        %1552 = vmatpush.bf16.msra.mxu0 %v1351
        %1553 = vmatmul.bf16.gmra.mxu0 %v1184
        %v1554 = vpop.f32.mrf.mxu0
        %v1555 = vadd.f32 %v1506, %v1554
        %v1556 = vpop.f32.mrf.mxu0
        %v1557 = vadd.f32 %v1508, %v1556
        %1558 = vmatmul.bf16.gmra.mxu0 %v1186
        %v1559 = vpop.f32.mrf.mxu0
        %v1560 = vadd.f32 %v1511, %v1559
        %v1561 = vpop.f32.mrf.mxu0
        %v1562 = vadd.f32 %v1513, %v1561
        %1563 = vmatmul.bf16.gmra.mxu0 %v1188
        %v1564 = vpop.f32.mrf.mxu0
        %v1565 = vadd.f32 %v1516, %v1564
        %v1566 = vpop.f32.mrf.mxu0
        %v1567 = vadd.f32 %v1518, %v1566
        %1568 = vmatmul.bf16.gmra.mxu0 %v1190
        %v1569 = vpop.f32.mrf.mxu0
        %v1570 = vadd.f32 %v1521, %v1569
        %v1571 = vpop.f32.mrf.mxu0
        %v1572 = vadd.f32 %v1523, %v1571
        %1573 = vmatmul.bf16.gmra.mxu0 %v1192
        %v1574 = vpop.f32.mrf.mxu0
        %v1575 = vadd.f32 %v1526, %v1574
        %v1576 = vpop.f32.mrf.mxu0
        %v1577 = vadd.f32 %v1528, %v1576
        %1578 = vmatmul.bf16.gmra.mxu0 %v1194
        %v1579 = vpop.f32.mrf.mxu0
        %v1580 = vadd.f32 %v1531, %v1579
        %v1581 = vpop.f32.mrf.mxu0
        %v1582 = vadd.f32 %v1533, %v1581
        %1583 = vmatmul.bf16.gmra.mxu0 %v1196
        %v1584 = vpop.f32.mrf.mxu0
        %v1585 = vadd.f32 %v1536, %v1584
        %v1586 = vpop.f32.mrf.mxu0
        %v1587 = vadd.f32 %v1538, %v1586
        %1588 = vmatmul.bf16.gmra.mxu0 %v1198
        %v1589 = vpop.f32.mrf.mxu0
        %v1590 = vadd.f32 %v1541, %v1589
        %v1591 = vpop.f32.mrf.mxu0
        %v1592 = vadd.f32 %v1543, %v1591
        %1593 = vdwg.mxu0
        %s1594 = scalar_lea.vmem [#allocation10], 4
        %v1595 = vld [vmem:[%s1594] ss:$8 sm:$0x3]
        %s1596 = scalar_lea.vmem [#allocation10], 5
        %v1597 = vld [vmem:[%s1596] ss:$8 sm:$0x3]
        %v1598 = vadd.f32 %v1457, %v1555
        %1599 = vadd.xlane.f32.xlu0 %v1598
        %v1600 = vpop.xlane.xlu0 %1599
        %v1601 = vadd.f32 %v1459, %v1557
        %1602 = vadd.xlane.f32.xlu0 %v1601
        %v1603 = vpop.xlane.xlu0 %1602
        %v1604 = vadd.f32 %v1462, %v1560
        %1605 = vadd.xlane.f32.xlu0 %v1604
        %v1606 = vpop.xlane.xlu0 %1605
        %v1607 = vadd.f32 %v1464, %v1562
        %1608 = vadd.xlane.f32.xlu0 %v1607
        %v1609 = vpop.xlane.xlu0 %1608
        %v1610 = vadd.f32 %v1467, %v1565
        %1611 = vadd.xlane.f32.xlu0 %v1610
        %v1612 = vpop.xlane.xlu0 %1611
        %v1613 = vadd.f32 %v1469, %v1567
        %1614 = vadd.xlane.f32.xlu0 %v1613
        %v1615 = vpop.xlane.xlu0 %1614
        %v1616 = vadd.f32 %v1472, %v1570
        %1617 = vadd.xlane.f32.xlu0 %v1616
        %v1618 = vpop.xlane.xlu0 %1617
        %v1619 = vadd.f32 %v1474, %v1572
        %1620 = vadd.xlane.f32.xlu0 %v1619
        %v1621 = vpop.xlane.xlu0 %1620
        %v1622 = vadd.f32 %v1477, %v1575
        %1623 = vadd.xlane.f32.xlu0 %v1622
        %v1624 = vpop.xlane.xlu0 %1623
        %v1625 = vadd.f32 %v1479, %v1577
        %1626 = vadd.xlane.f32.xlu0 %v1625
        %v1627 = vpop.xlane.xlu0 %1626
        %v1628 = vadd.f32 %v1482, %v1580
        %1629 = vadd.xlane.f32.xlu0 %v1628
        %v1630 = vpop.xlane.xlu0 %1629
        %v1631 = vadd.f32 %v1484, %v1582
        %1632 = vadd.xlane.f32.xlu0 %v1631
        %v1633 = vpop.xlane.xlu0 %1632
        %v1634 = vadd.f32 %v1487, %v1585
        %1635 = vadd.xlane.f32.xlu0 %v1634
        %v1636 = vpop.xlane.xlu0 %1635
        %v1637 = vadd.f32 %v1489, %v1587
        %1638 = vadd.xlane.f32.xlu0 %v1637
        %v1639 = vpop.xlane.xlu0 %1638
        %v1640 = vadd.f32 %v1492, %v1590
        %1641 = vadd.xlane.f32.xlu0 %v1640
        %v1642 = vpop.xlane.xlu0 %1641
        %v1643 = vadd.f32 %v1494, %v1592
        %1644 = vadd.xlane.f32.xlu0 %v1643
        %v1645 = vpop.xlane.xlu0 %1644
        %v1646 = vmul.f32 %v1600, %v660
        %v1647 = vmul.f32 %v1603, %v660
        %v1648 = vmul.f32 %v1606, %v660
        %v1649 = vmul.f32 %v1609, %v660
        %v1650 = vmul.f32 %v1612, %v660
        %v1651 = vmul.f32 %v1615, %v660
        %v1652 = vmul.f32 %v1618, %v660
        %v1653 = vmul.f32 %v1621, %v660
        %v1654 = vmul.f32 %v1624, %v660
        %v1655 = vmul.f32 %v1627, %v660
        %v1656 = vmul.f32 %v1630, %v660
        %v1657 = vmul.f32 %v1633, %v660
        %v1658 = vmul.f32 %v1636, %v660
        %v1659 = vmul.f32 %v1639, %v660
        %v1660 = vmul.f32 %v1642, %v660
        %v1661 = vmul.f32 %v1645, %v660
        %v1662 = vsub.f32 %v1457, %v1646
        %v1663 = vsub.f32 %v1555, %v1646
        %v1664 = vsub.f32 %v1459, %v1647
        %v1665 = vsub.f32 %v1557, %v1647
        %v1666 = vsub.f32 %v1462, %v1648
        %v1667 = vsub.f32 %v1560, %v1648
        %v1668 = vsub.f32 %v1464, %v1649
        %v1669 = vsub.f32 %v1562, %v1649
        %v1670 = vsub.f32 %v1467, %v1650
        %v1671 = vsub.f32 %v1565, %v1650
        %v1672 = vsub.f32 %v1469, %v1651
        %v1673 = vsub.f32 %v1567, %v1651
        %v1674 = vsub.f32 %v1472, %v1652
        %v1675 = vsub.f32 %v1570, %v1652
        %v1676 = vsub.f32 %v1474, %v1653
        %v1677 = vsub.f32 %v1572, %v1653
        %v1678 = vsub.f32 %v1477, %v1654
        %v1679 = vsub.f32 %v1575, %v1654
        %v1680 = vsub.f32 %v1479, %v1655
        %v1681 = vsub.f32 %v1577, %v1655
        %v1682 = vsub.f32 %v1482, %v1656
        %v1683 = vsub.f32 %v1580, %v1656
        %v1684 = vsub.f32 %v1484, %v1657
        %v1685 = vsub.f32 %v1582, %v1657
        %v1686 = vsub.f32 %v1487, %v1658
        %v1687 = vsub.f32 %v1585, %v1658
        %v1688 = vsub.f32 %v1489, %v1659
        %v1689 = vsub.f32 %v1587, %v1659
        %v1690 = vsub.f32 %v1492, %v1660
        %v1691 = vsub.f32 %v1590, %v1660
        %v1692 = vsub.f32 %v1494, %v1661
        %v1693 = vsub.f32 %v1592, %v1661
        %v1694 = vmul.f32 %v1662, %v1662
        %v1695 = vmul.f32 %v1663, %v1663
        %v1696 = vmul.f32 %v1664, %v1664
        %v1697 = vmul.f32 %v1665, %v1665
        %v1698 = vmul.f32 %v1666, %v1666
        %v1699 = vmul.f32 %v1667, %v1667
        %v1700 = vmul.f32 %v1668, %v1668
        %v1701 = vmul.f32 %v1669, %v1669
        %v1702 = vmul.f32 %v1670, %v1670
        %v1703 = vmul.f32 %v1671, %v1671
        %v1704 = vmul.f32 %v1672, %v1672
        %v1705 = vmul.f32 %v1673, %v1673
        %v1706 = vmul.f32 %v1674, %v1674
        %v1707 = vmul.f32 %v1675, %v1675
        %v1708 = vmul.f32 %v1676, %v1676
        %v1709 = vmul.f32 %v1677, %v1677
        %v1710 = vmul.f32 %v1678, %v1678
        %v1711 = vmul.f32 %v1679, %v1679
        %v1712 = vmul.f32 %v1680, %v1680
        %v1713 = vmul.f32 %v1681, %v1681
        %v1714 = vmul.f32 %v1682, %v1682
        %v1715 = vmul.f32 %v1683, %v1683
        %v1716 = vmul.f32 %v1684, %v1684
        %v1717 = vmul.f32 %v1685, %v1685
        %v1718 = vmul.f32 %v1686, %v1686
        %v1719 = vmul.f32 %v1687, %v1687
        %v1720 = vmul.f32 %v1688, %v1688
        %v1721 = vmul.f32 %v1689, %v1689
        %v1722 = vmul.f32 %v1690, %v1690
        %v1723 = vmul.f32 %v1691, %v1691
        %v1724 = vmul.f32 %v1692, %v1692
        %v1725 = vmul.f32 %v1693, %v1693
        %v1726 = vadd.f32 %v1694, %v1695
        %1727 = vadd.xlane.f32.xlu0 %v1726
        %v1728 = vpop.xlane.xlu0 %1727
        %v1729 = vadd.f32 %v1696, %v1697
        %1730 = vadd.xlane.f32.xlu0 %v1729
        %v1731 = vpop.xlane.xlu0 %1730
        %v1732 = vadd.f32 %v1698, %v1699
        %1733 = vadd.xlane.f32.xlu0 %v1732
        %v1734 = vpop.xlane.xlu0 %1733
        %v1735 = vadd.f32 %v1700, %v1701
        %1736 = vadd.xlane.f32.xlu0 %v1735
        %v1737 = vpop.xlane.xlu0 %1736
        %v1738 = vadd.f32 %v1702, %v1703
        %1739 = vadd.xlane.f32.xlu0 %v1738
        %v1740 = vpop.xlane.xlu0 %1739
        %v1741 = vadd.f32 %v1704, %v1705
        %1742 = vadd.xlane.f32.xlu0 %v1741
        %v1743 = vpop.xlane.xlu0 %1742
        %v1744 = vadd.f32 %v1706, %v1707
        %1745 = vadd.xlane.f32.xlu0 %v1744
        %v1746 = vpop.xlane.xlu0 %1745
        %v1747 = vadd.f32 %v1708, %v1709
        %1748 = vadd.xlane.f32.xlu0 %v1747
        %v1749 = vpop.xlane.xlu0 %1748
        %v1750 = vadd.f32 %v1710, %v1711
        %1751 = vadd.xlane.f32.xlu0 %v1750
        %v1752 = vpop.xlane.xlu0 %1751
        %v1753 = vadd.f32 %v1712, %v1713
        %1754 = vadd.xlane.f32.xlu0 %v1753
        %v1755 = vpop.xlane.xlu0 %1754
        %v1756 = vadd.f32 %v1714, %v1715
        %1757 = vadd.xlane.f32.xlu0 %v1756
        %v1758 = vpop.xlane.xlu0 %1757
        %v1759 = vadd.f32 %v1716, %v1717
        %1760 = vadd.xlane.f32.xlu0 %v1759
        %v1761 = vpop.xlane.xlu0 %1760
        %v1762 = vadd.f32 %v1718, %v1719
        %1763 = vadd.xlane.f32.xlu0 %v1762
        %v1764 = vpop.xlane.xlu0 %1763
        %v1765 = vadd.f32 %v1720, %v1721
        %1766 = vadd.xlane.f32.xlu0 %v1765
        %v1767 = vpop.xlane.xlu0 %1766
        %v1768 = vadd.f32 %v1722, %v1723
        %1769 = vadd.xlane.f32.xlu0 %v1768
        %v1770 = vpop.xlane.xlu0 %1769
        %v1771 = vadd.f32 %v1724, %v1725
        %1772 = vadd.xlane.f32.xlu0 %v1771
        %v1773 = vpop.xlane.xlu0 %1772
        %v1774 = vmul.f32 %v1728, %v660
        %v1775 = vmul.f32 %v1731, %v660
        %v1776 = vmul.f32 %v1734, %v660
        %v1777 = vmul.f32 %v1737, %v660
        %v1778 = vmul.f32 %v1740, %v660
        %v1779 = vmul.f32 %v1743, %v660
        %v1780 = vmul.f32 %v1746, %v660
        %v1781 = vmul.f32 %v1749, %v660
        %v1782 = vmul.f32 %v1752, %v660
        %v1783 = vmul.f32 %v1755, %v660
        %v1784 = vmul.f32 %v1758, %v660
        %v1785 = vmul.f32 %v1761, %v660
        %v1786 = vmul.f32 %v1764, %v660
        %v1787 = vmul.f32 %v1767, %v660
        %v1788 = vmul.f32 %v1770, %v660
        %v1789 = vmul.f32 %v1773, %v660
        %v1790 = vadd.f32 %v1774, 1e-05
        %v1791 = vadd.f32 %v1775, 1e-05
        %v1792 = vadd.f32 %v1776, 1e-05
        %v1793 = vadd.f32 %v1777, 1e-05
        %v1794 = vadd.f32 %v1778, 1e-05
        %v1795 = vadd.f32 %v1779, 1e-05
        %v1796 = vadd.f32 %v1780, 1e-05
        %v1797 = vadd.f32 %v1781, 1e-05
        %v1798 = vadd.f32 %v1782, 1e-05
        %v1799 = vadd.f32 %v1783, 1e-05
        %v1800 = vadd.f32 %v1784, 1e-05
        %v1801 = vadd.f32 %v1785, 1e-05
        %v1802 = vadd.f32 %v1786, 1e-05
        %v1803 = vadd.f32 %v1787, 1e-05
        %v1804 = vadd.f32 %v1788, 1e-05
        %v1805 = vadd.f32 %v1789, 1e-05
        %v1806 = vrsqrt.pop %v1790
        %v1807 = vmul.f32 %v1806, %v1790
        %v1808 = vmul.f32 %v1807, %v1806
        %v1809 = vmul.f32 0.5, %v1808
        %v1810 = vsub.f32 1.5, %v1809
        %v1811 = vmul.f32 %v1806, %v1810
        %vm1812 = vweird.f32 %v1790
        %vm1813 = vweird.f32 %v1806
        %vm1814 = vmor %vm1812, %vm1813
        %v1815 = vsel %vm1814, %v1806, %v1811
        %v1816 = vrsqrt.pop %v1791
        %v1817 = vmul.f32 %v1816, %v1791
        %v1818 = vmul.f32 %v1817, %v1816
        %v1819 = vmul.f32 0.5, %v1818
        %v1820 = vsub.f32 1.5, %v1819
        %v1821 = vmul.f32 %v1816, %v1820
        %vm1822 = vweird.f32 %v1791
        %vm1823 = vweird.f32 %v1816
        %vm1824 = vmor %vm1822, %vm1823
        %v1825 = vsel %vm1824, %v1816, %v1821
        %v1826 = vrsqrt.pop %v1792
        %v1827 = vmul.f32 %v1826, %v1792
        %v1828 = vmul.f32 %v1827, %v1826
        %v1829 = vmul.f32 0.5, %v1828
        %v1830 = vsub.f32 1.5, %v1829
        %v1831 = vmul.f32 %v1826, %v1830
        %vm1832 = vweird.f32 %v1792
        %vm1833 = vweird.f32 %v1826
        %vm1834 = vmor %vm1832, %vm1833
        %v1835 = vsel %vm1834, %v1826, %v1831
        %v1836 = vrsqrt.pop %v1793
        %v1837 = vmul.f32 %v1836, %v1793
        %v1838 = vmul.f32 %v1837, %v1836
        %v1839 = vmul.f32 0.5, %v1838
        %v1840 = vsub.f32 1.5, %v1839
        %v1841 = vmul.f32 %v1836, %v1840
        %vm1842 = vweird.f32 %v1793
        %vm1843 = vweird.f32 %v1836
        %vm1844 = vmor %vm1842, %vm1843
        %v1845 = vsel %vm1844, %v1836, %v1841
        %v1846 = vrsqrt.pop %v1794
        %v1847 = vmul.f32 %v1846, %v1794
        %v1848 = vmul.f32 %v1847, %v1846
        %v1849 = vmul.f32 0.5, %v1848
        %v1850 = vsub.f32 1.5, %v1849
        %v1851 = vmul.f32 %v1846, %v1850
        %vm1852 = vweird.f32 %v1794
        %vm1853 = vweird.f32 %v1846
        %vm1854 = vmor %vm1852, %vm1853
        %v1855 = vsel %vm1854, %v1846, %v1851
        %v1856 = vrsqrt.pop %v1795
        %v1857 = vmul.f32 %v1856, %v1795
        %v1858 = vmul.f32 %v1857, %v1856
        %v1859 = vmul.f32 0.5, %v1858
        %v1860 = vsub.f32 1.5, %v1859
        %v1861 = vmul.f32 %v1856, %v1860
        %vm1862 = vweird.f32 %v1795
        %vm1863 = vweird.f32 %v1856
        %vm1864 = vmor %vm1862, %vm1863
        %v1865 = vsel %vm1864, %v1856, %v1861
        %v1866 = vrsqrt.pop %v1796
        %v1867 = vmul.f32 %v1866, %v1796
        %v1868 = vmul.f32 %v1867, %v1866
        %v1869 = vmul.f32 0.5, %v1868
        %v1870 = vsub.f32 1.5, %v1869
        %v1871 = vmul.f32 %v1866, %v1870
        %vm1872 = vweird.f32 %v1796
        %vm1873 = vweird.f32 %v1866
        %vm1874 = vmor %vm1872, %vm1873
        %v1875 = vsel %vm1874, %v1866, %v1871
        %v1876 = vrsqrt.pop %v1797
        %v1877 = vmul.f32 %v1876, %v1797
        %v1878 = vmul.f32 %v1877, %v1876
        %v1879 = vmul.f32 0.5, %v1878
        %v1880 = vsub.f32 1.5, %v1879
        %v1881 = vmul.f32 %v1876, %v1880
        %vm1882 = vweird.f32 %v1797
        %vm1883 = vweird.f32 %v1876
        %vm1884 = vmor %vm1882, %vm1883
        %v1885 = vsel %vm1884, %v1876, %v1881
        %v1886 = vrsqrt.pop %v1798
        %v1887 = vmul.f32 %v1886, %v1798
        %v1888 = vmul.f32 %v1887, %v1886
        %v1889 = vmul.f32 0.5, %v1888
        %v1890 = vsub.f32 1.5, %v1889
        %v1891 = vmul.f32 %v1886, %v1890
        %vm1892 = vweird.f32 %v1798
        %vm1893 = vweird.f32 %v1886
        %vm1894 = vmor %vm1892, %vm1893
        %v1895 = vsel %vm1894, %v1886, %v1891
        %v1896 = vrsqrt.pop %v1799
        %v1897 = vmul.f32 %v1896, %v1799
        %v1898 = vmul.f32 %v1897, %v1896
        %v1899 = vmul.f32 0.5, %v1898
        %v1900 = vsub.f32 1.5, %v1899
        %v1901 = vmul.f32 %v1896, %v1900
        %vm1902 = vweird.f32 %v1799
        %vm1903 = vweird.f32 %v1896
        %vm1904 = vmor %vm1902, %vm1903
        %v1905 = vsel %vm1904, %v1896, %v1901
        %v1906 = vrsqrt.pop %v1800
        %v1907 = vmul.f32 %v1906, %v1800
        %v1908 = vmul.f32 %v1907, %v1906
        %v1909 = vmul.f32 0.5, %v1908
        %v1910 = vsub.f32 1.5, %v1909
        %v1911 = vmul.f32 %v1906, %v1910
        %vm1912 = vweird.f32 %v1800
        %vm1913 = vweird.f32 %v1906
        %vm1914 = vmor %vm1912, %vm1913
        %v1915 = vsel %vm1914, %v1906, %v1911
        %v1916 = vrsqrt.pop %v1801
        %v1917 = vmul.f32 %v1916, %v1801
        %v1918 = vmul.f32 %v1917, %v1916
        %v1919 = vmul.f32 0.5, %v1918
        %v1920 = vsub.f32 1.5, %v1919
        %v1921 = vmul.f32 %v1916, %v1920
        %vm1922 = vweird.f32 %v1801
        %vm1923 = vweird.f32 %v1916
        %vm1924 = vmor %vm1922, %vm1923
        %v1925 = vsel %vm1924, %v1916, %v1921
        %v1926 = vrsqrt.pop %v1802
        %v1927 = vmul.f32 %v1926, %v1802
        %v1928 = vmul.f32 %v1927, %v1926
        %v1929 = vmul.f32 0.5, %v1928
        %v1930 = vsub.f32 1.5, %v1929
        %v1931 = vmul.f32 %v1926, %v1930
        %vm1932 = vweird.f32 %v1802
        %vm1933 = vweird.f32 %v1926
        %vm1934 = vmor %vm1932, %vm1933
        %v1935 = vsel %vm1934, %v1926, %v1931
        %v1936 = vrsqrt.pop %v1803
        %v1937 = vmul.f32 %v1936, %v1803
        %v1938 = vmul.f32 %v1937, %v1936
        %v1939 = vmul.f32 0.5, %v1938
        %v1940 = vsub.f32 1.5, %v1939
        %v1941 = vmul.f32 %v1936, %v1940
        %vm1942 = vweird.f32 %v1803
        %vm1943 = vweird.f32 %v1936
        %vm1944 = vmor %vm1942, %vm1943
        %v1945 = vsel %vm1944, %v1936, %v1941
        %v1946 = vrsqrt.pop %v1804
        %v1947 = vmul.f32 %v1946, %v1804
        %v1948 = vmul.f32 %v1947, %v1946
        %v1949 = vmul.f32 0.5, %v1948
        %v1950 = vsub.f32 1.5, %v1949
        %v1951 = vmul.f32 %v1946, %v1950
        %vm1952 = vweird.f32 %v1804
        %vm1953 = vweird.f32 %v1946
        %vm1954 = vmor %vm1952, %vm1953
        %v1955 = vsel %vm1954, %v1946, %v1951
        %v1956 = vrsqrt.pop %v1805
        %v1957 = vmul.f32 %v1956, %v1805
        %v1958 = vmul.f32 %v1957, %v1956
        %v1959 = vmul.f32 0.5, %v1958
        %v1960 = vsub.f32 1.5, %v1959
        %v1961 = vmul.f32 %v1956, %v1960
        %vm1962 = vweird.f32 %v1805
        %vm1963 = vweird.f32 %v1956
        %vm1964 = vmor %vm1962, %vm1963
        %v1965 = vsel %vm1964, %v1956, %v1961
        %v1966 = vmul.f32 %v1662, %v1815
        %v1967 = vmul.f32 %v1663, %v1815
        %v1968 = vmul.f32 %v1664, %v1825
        %v1969 = vmul.f32 %v1665, %v1825
        %v1970 = vmul.f32 %v1666, %v1835
        %v1971 = vmul.f32 %v1667, %v1835
        %v1972 = vmul.f32 %v1668, %v1845
        %v1973 = vmul.f32 %v1669, %v1845
        %v1974 = vmul.f32 %v1670, %v1855
        %v1975 = vmul.f32 %v1671, %v1855
        %v1976 = vmul.f32 %v1672, %v1865
        %v1977 = vmul.f32 %v1673, %v1865
        %v1978 = vmul.f32 %v1674, %v1875
        %v1979 = vmul.f32 %v1675, %v1875
        %v1980 = vmul.f32 %v1676, %v1885
        %v1981 = vmul.f32 %v1677, %v1885
        %v1982 = vmul.f32 %v1678, %v1895
        %v1983 = vmul.f32 %v1679, %v1895
        %v1984 = vmul.f32 %v1680, %v1905
        %v1985 = vmul.f32 %v1681, %v1905
        %v1986 = vmul.f32 %v1682, %v1915
        %v1987 = vmul.f32 %v1683, %v1915
        %v1988 = vmul.f32 %v1684, %v1925
        %v1989 = vmul.f32 %v1685, %v1925
        %v1990 = vmul.f32 %v1686, %v1935
        %v1991 = vmul.f32 %v1687, %v1935
        %v1992 = vmul.f32 %v1688, %v1945
        %v1993 = vmul.f32 %v1689, %v1945
        %v1994 = vmul.f32 %v1690, %v1955
        %v1995 = vmul.f32 %v1691, %v1955
        %v1996 = vmul.f32 %v1692, %v1965
        %v1997 = vmul.f32 %v1693, %v1965
        %v1999 = vperm.slane %v1595, 0
        %v2000 = vperm.slane %v1595, 1
        %v2003 = vmul.f32 %v1966, %v1999
        %v2004 = vmul.f32 %v1967, %v2000
        %v2005 = vmul.f32 %v1968, %v1999
        %v2006 = vmul.f32 %v1969, %v2000
        %v2007 = vmul.f32 %v1970, %v1999
        %v2008 = vmul.f32 %v1971, %v2000
        %v2009 = vmul.f32 %v1972, %v1999
        %v2010 = vmul.f32 %v1973, %v2000
        %v2011 = vmul.f32 %v1974, %v1999
        %v2012 = vmul.f32 %v1975, %v2000
        %v2013 = vmul.f32 %v1976, %v1999
        %v2014 = vmul.f32 %v1977, %v2000
        %v2015 = vmul.f32 %v1978, %v1999
        %v2016 = vmul.f32 %v1979, %v2000
        %v2017 = vmul.f32 %v1980, %v1999
        %v2018 = vmul.f32 %v1981, %v2000
        %v2019 = vmul.f32 %v1982, %v1999
        %v2020 = vmul.f32 %v1983, %v2000
        %v2021 = vmul.f32 %v1984, %v1999
        %v2022 = vmul.f32 %v1985, %v2000
        %v2023 = vmul.f32 %v1986, %v1999
        %v2024 = vmul.f32 %v1987, %v2000
        %v2025 = vmul.f32 %v1988, %v1999
        %v2026 = vmul.f32 %v1989, %v2000
        %v2027 = vmul.f32 %v1990, %v1999
        %v2028 = vmul.f32 %v1991, %v2000
        %v2029 = vmul.f32 %v1992, %v1999
        %v2030 = vmul.f32 %v1993, %v2000
        %v2031 = vmul.f32 %v1994, %v1999
        %v2032 = vmul.f32 %v1995, %v2000
        %v2033 = vmul.f32 %v1996, %v1999
        %v2034 = vmul.f32 %v1997, %v2000
        %v2036 = vperm.slane %v1597, 0
        %v2037 = vperm.slane %v1597, 1
        %v2040 = vadd.f32 %v2003, %v2036
        %v2041 = vadd.f32 %v2004, %v2037
        %v2042 = vadd.f32 %v2005, %v2036
        %v2043 = vadd.f32 %v2006, %v2037
        %v2044 = vadd.f32 %v2007, %v2036
        %v2045 = vadd.f32 %v2008, %v2037
        %v2046 = vadd.f32 %v2009, %v2036
        %v2047 = vadd.f32 %v2010, %v2037
        %v2048 = vadd.f32 %v2011, %v2036
        %v2049 = vadd.f32 %v2012, %v2037
        %v2050 = vadd.f32 %v2013, %v2036
        %v2051 = vadd.f32 %v2014, %v2037
        %v2052 = vadd.f32 %v2015, %v2036
        %v2053 = vadd.f32 %v2016, %v2037
        %v2054 = vadd.f32 %v2017, %v2036
        %v2055 = vadd.f32 %v2018, %v2037
        %v2056 = vadd.f32 %v2019, %v2036
        %v2057 = vadd.f32 %v2020, %v2037
        %v2058 = vadd.f32 %v2021, %v2036
        %v2059 = vadd.f32 %v2022, %v2037
        %v2060 = vadd.f32 %v2023, %v2036
        %v2061 = vadd.f32 %v2024, %v2037
        %v2062 = vadd.f32 %v2025, %v2036
        %v2063 = vadd.f32 %v2026, %v2037
        %v2064 = vadd.f32 %v2027, %v2036
        %v2065 = vadd.f32 %v2028, %v2037
        %v2066 = vadd.f32 %v2029, %v2036
        %v2067 = vadd.f32 %v2030, %v2037
        %v2068 = vadd.f32 %v2031, %v2036
        %v2069 = vadd.f32 %v2032, %v2037
        %v2070 = vadd.f32 %v2033, %v2036
        %v2071 = vadd.f32 %v2034, %v2037
        %vm2072 = vcmp.ge.f32.partialorder %v2040, 0.0
        %vm2073 = vcmp.ge.f32.partialorder %v2041, 0.0
        %vm2074 = vcmp.ge.f32.partialorder %v2042, 0.0
        %vm2075 = vcmp.ge.f32.partialorder %v2043, 0.0
        %vm2076 = vcmp.ge.f32.partialorder %v2044, 0.0
        %vm2077 = vcmp.ge.f32.partialorder %v2045, 0.0
        %vm2078 = vcmp.ge.f32.partialorder %v2046, 0.0
        %vm2079 = vcmp.ge.f32.partialorder %v2047, 0.0
        %vm2080 = vcmp.ge.f32.partialorder %v2048, 0.0
        %vm2081 = vcmp.ge.f32.partialorder %v2049, 0.0
        %vm2082 = vcmp.ge.f32.partialorder %v2050, 0.0
        %vm2083 = vcmp.ge.f32.partialorder %v2051, 0.0
        %vm2084 = vcmp.ge.f32.partialorder %v2052, 0.0
        %vm2085 = vcmp.ge.f32.partialorder %v2053, 0.0
        %vm2086 = vcmp.ge.f32.partialorder %v2054, 0.0
        %vm2087 = vcmp.ge.f32.partialorder %v2055, 0.0
        %vm2088 = vcmp.ge.f32.partialorder %v2056, 0.0
        %vm2089 = vcmp.ge.f32.partialorder %v2057, 0.0
        %vm2090 = vcmp.ge.f32.partialorder %v2058, 0.0
        %vm2091 = vcmp.ge.f32.partialorder %v2059, 0.0
        %vm2092 = vcmp.ge.f32.partialorder %v2060, 0.0
        %vm2093 = vcmp.ge.f32.partialorder %v2061, 0.0
        %vm2094 = vcmp.ge.f32.partialorder %v2062, 0.0
        %vm2095 = vcmp.ge.f32.partialorder %v2063, 0.0
        %vm2096 = vcmp.ge.f32.partialorder %v2064, 0.0
        %vm2097 = vcmp.ge.f32.partialorder %v2065, 0.0
        %vm2098 = vcmp.ge.f32.partialorder %v2066, 0.0
        %vm2099 = vcmp.ge.f32.partialorder %v2067, 0.0
        %vm2100 = vcmp.ge.f32.partialorder %v2068, 0.0
        %vm2101 = vcmp.ge.f32.partialorder %v2069, 0.0
        %vm2102 = vcmp.ge.f32.partialorder %v2070, 0.0
        %vm2103 = vcmp.ge.f32.partialorder %v2071, 0.0
        %v2104 = vmul.f32 %v2040, 0.01
        %v2105 = vmul.f32 %v2041, 0.01
        %v2106 = vmul.f32 %v2042, 0.01
        %v2107 = vmul.f32 %v2043, 0.01
        %v2108 = vmul.f32 %v2044, 0.01
        %v2109 = vmul.f32 %v2045, 0.01
        %v2110 = vmul.f32 %v2046, 0.01
        %v2111 = vmul.f32 %v2047, 0.01
        %v2112 = vmul.f32 %v2048, 0.01
        %v2113 = vmul.f32 %v2049, 0.01
        %v2114 = vmul.f32 %v2050, 0.01
        %v2115 = vmul.f32 %v2051, 0.01
        %v2116 = vmul.f32 %v2052, 0.01
        %v2117 = vmul.f32 %v2053, 0.01
        %v2118 = vmul.f32 %v2054, 0.01
        %v2119 = vmul.f32 %v2055, 0.01
        %v2120 = vmul.f32 %v2056, 0.01
        %v2121 = vmul.f32 %v2057, 0.01
        %v2122 = vmul.f32 %v2058, 0.01
        %v2123 = vmul.f32 %v2059, 0.01
        %v2124 = vmul.f32 %v2060, 0.01
        %v2125 = vmul.f32 %v2061, 0.01
        %v2126 = vmul.f32 %v2062, 0.01
        %v2127 = vmul.f32 %v2063, 0.01
        %v2128 = vmul.f32 %v2064, 0.01
        %v2129 = vmul.f32 %v2065, 0.01
        %v2130 = vmul.f32 %v2066, 0.01
        %v2131 = vmul.f32 %v2067, 0.01
        %v2132 = vmul.f32 %v2068, 0.01
        %v2133 = vmul.f32 %v2069, 0.01
        %v2134 = vmul.f32 %v2070, 0.01
        %v2135 = vmul.f32 %v2071, 0.01
        %v2136 = vsel %vm2072, %v2040, %v2104
        %v2137 = vsel %vm2073, %v2041, %v2105
        %v2138 = vsel %vm2074, %v2042, %v2106
        %v2139 = vsel %vm2075, %v2043, %v2107
        %v2140 = vsel %vm2076, %v2044, %v2108
        %v2141 = vsel %vm2077, %v2045, %v2109
        %v2142 = vsel %vm2078, %v2046, %v2110
        %v2143 = vsel %vm2079, %v2047, %v2111
        %v2144 = vsel %vm2080, %v2048, %v2112
        %v2145 = vsel %vm2081, %v2049, %v2113
        %v2146 = vsel %vm2082, %v2050, %v2114
        %v2147 = vsel %vm2083, %v2051, %v2115
        %v2148 = vsel %vm2084, %v2052, %v2116
        %v2149 = vsel %vm2085, %v2053, %v2117
        %v2150 = vsel %vm2086, %v2054, %v2118
        %v2151 = vsel %vm2087, %v2055, %v2119
        %v2152 = vsel %vm2088, %v2056, %v2120
        %v2153 = vsel %vm2089, %v2057, %v2121
        %v2154 = vsel %vm2090, %v2058, %v2122
        %v2155 = vsel %vm2091, %v2059, %v2123
        %v2156 = vsel %vm2092, %v2060, %v2124
        %v2157 = vsel %vm2093, %v2061, %v2125
        %v2158 = vsel %vm2094, %v2062, %v2126
        %v2159 = vsel %vm2095, %v2063, %v2127
        %v2160 = vsel %vm2096, %v2064, %v2128
        %v2161 = vsel %vm2097, %v2065, %v2129
        %v2162 = vsel %vm2098, %v2066, %v2130
        %v2163 = vsel %vm2099, %v2067, %v2131
        %v2164 = vsel %vm2100, %v2068, %v2132
        %v2165 = vsel %vm2101, %v2069, %v2133
        %v2166 = vsel %vm2102, %v2070, %v2134
        %v2167 = vsel %vm2103, %v2071, %v2135
        %v2168 = vpack.c.bf16 %v2138, %v2136
        %v2169 = vpack.c.bf16 %v2139, %v2137
        %v2170 = vpack.c.bf16 %v2142, %v2140
        %v2171 = vpack.c.bf16 %v2143, %v2141
        %v2172 = vpack.c.bf16 %v2146, %v2144
        %v2173 = vpack.c.bf16 %v2147, %v2145
        %v2174 = vpack.c.bf16 %v2150, %v2148
        %v2175 = vpack.c.bf16 %v2151, %v2149
        %v2176 = vpack.c.bf16 %v2154, %v2152
        %v2177 = vpack.c.bf16 %v2155, %v2153
        %v2178 = vpack.c.bf16 %v2158, %v2156
        %v2179 = vpack.c.bf16 %v2159, %v2157
        %v2180 = vpack.c.bf16 %v2162, %v2160
        %v2181 = vpack.c.bf16 %v2163, %v2161
        %v2182 = vpack.c.bf16 %v2166, %v2164
        %v2183 = vpack.c.bf16 %v2167, %v2165
        %v2184 = vld [vmem:[#allocation8] sm:$0xf]
        %v2185 = vld [vmem:[#allocation8 + $0x4] sm:$0xf]
        %v2186 = vld [vmem:[#allocation8 + $0x8] sm:$0xf]
        %v2187 = vld [vmem:[#allocation8 + $0xc] sm:$0xf]
        %v2188 = vld [vmem:[#allocation8 + $0x10] sm:$0xf]
        %v2189 = vld [vmem:[#allocation8 + $0x14] sm:$0xf]
        %v2190 = vld [vmem:[#allocation8 + $0x18] sm:$0xf]
        %v2191 = vld [vmem:[#allocation8 + $0x1c] sm:$0xf]
        %v2192 = vld [vmem:[#allocation8 + $0x20] sm:$0xf]
        %v2193 = vld [vmem:[#allocation8 + $0x24] sm:$0xf]
        %v2194 = vld [vmem:[#allocation8 + $0x28] sm:$0xf]
        %v2195 = vld [vmem:[#allocation8 + $0x2c] sm:$0xf]
        %v2196 = vld [vmem:[#allocation8 + $0x30] sm:$0xf]
        %v2197 = vld [vmem:[#allocation8 + $0x34] sm:$0xf]
        %v2198 = vld [vmem:[#allocation8 + $0x38] sm:$0xf]
        %v2199 = vld [vmem:[#allocation8 + $0x3c] sm:$0xf]
        %v2200 = vld [vmem:[#allocation8 + $0x40] sm:$0xf]
        %v2201 = vld [vmem:[#allocation8 + $0x44] sm:$0xf]
        %v2202 = vld [vmem:[#allocation8 + $0x48] sm:$0xf]
        %v2203 = vld [vmem:[#allocation8 + $0x4c] sm:$0xf]
        %v2204 = vld [vmem:[#allocation8 + $0x50] sm:$0xf]
        %v2205 = vld [vmem:[#allocation8 + $0x54] sm:$0xf]
        %v2206 = vld [vmem:[#allocation8 + $0x58] sm:$0xf]
        %v2207 = vld [vmem:[#allocation8 + $0x5c] sm:$0xf]
        %v2208 = vld [vmem:[#allocation8 + $0x60] sm:$0xf]
        %v2209 = vld [vmem:[#allocation8 + $0x64] sm:$0xf]
        %v2210 = vld [vmem:[#allocation8 + $0x68] sm:$0xf]
        %v2211 = vld [vmem:[#allocation8 + $0x6c] sm:$0xf]
        %v2212 = vld [vmem:[#allocation8 + $0x70] sm:$0xf]
        %v2213 = vld [vmem:[#allocation8 + $0x74] sm:$0xf]
        %v2214 = vld [vmem:[#allocation8 + $0x78] sm:$0xf]
        %v2215 = vld [vmem:[#allocation8 + $0x7c] sm:$0xf]
        %v2216 = vld [vmem:[%s5] sm:$0x1]
        %v2218 = vperm.slane %v2216, 0
        %v2252 = vunpack.c.l.b16 %v2184
        %v2253 = vunpack.c.l.b16 %v2185
        %v2254 = vunpack.c.l.b16 %v2186
        %v2255 = vunpack.c.l.b16 %v2187
        %v2256 = vunpack.c.l.b16 %v2188
        %v2257 = vunpack.c.l.b16 %v2189
        %v2258 = vunpack.c.l.b16 %v2190
        %v2259 = vunpack.c.l.b16 %v2191
        %v2260 = vunpack.c.l.b16 %v2192
        %v2261 = vunpack.c.l.b16 %v2193
        %v2262 = vunpack.c.l.b16 %v2194
        %v2263 = vunpack.c.l.b16 %v2195
        %v2264 = vunpack.c.l.b16 %v2196
        %v2265 = vunpack.c.l.b16 %v2197
        %v2266 = vunpack.c.l.b16 %v2198
        %v2267 = vunpack.c.l.b16 %v2199
        %v2268 = vunpack.c.l.b16 %v2200
        %v2269 = vunpack.c.l.b16 %v2201
        %v2270 = vunpack.c.l.b16 %v2202
        %v2271 = vunpack.c.l.b16 %v2203
        %v2272 = vunpack.c.l.b16 %v2204
        %v2273 = vunpack.c.l.b16 %v2205
        %v2274 = vunpack.c.l.b16 %v2206
        %v2275 = vunpack.c.l.b16 %v2207
        %v2276 = vunpack.c.l.b16 %v2208
        %v2277 = vunpack.c.l.b16 %v2209
        %v2278 = vunpack.c.l.b16 %v2210
        %v2279 = vunpack.c.l.b16 %v2211
        %v2280 = vunpack.c.l.b16 %v2212
        %v2281 = vunpack.c.l.b16 %v2213
        %v2282 = vunpack.c.l.b16 %v2214
        %v2283 = vunpack.c.l.b16 %v2215
        %v2284 = vpack.c.b16 %v2253, %v2252
        %v2285 = vpack.c.b16 %v2255, %v2254
        %v2286 = vpack.c.b16 %v2257, %v2256
        %v2287 = vpack.c.b16 %v2259, %v2258
        %v2288 = vpack.c.b16 %v2261, %v2260
        %v2289 = vpack.c.b16 %v2263, %v2262
        %v2290 = vpack.c.b16 %v2265, %v2264
        %v2291 = vpack.c.b16 %v2267, %v2266
        %v2292 = vpack.c.b16 %v2269, %v2268
        %v2293 = vpack.c.b16 %v2271, %v2270
        %v2294 = vpack.c.b16 %v2273, %v2272
        %v2295 = vpack.c.b16 %v2275, %v2274
        %v2296 = vpack.c.b16 %v2277, %v2276
        %v2297 = vpack.c.b16 %v2279, %v2278
        %v2298 = vpack.c.b16 %v2281, %v2280
        %v2299 = vpack.c.b16 %v2283, %v2282
        %2316 = vmatpush.bf16.msra.mxu0 %v2291
        %2317 = vmatpush.bf16.msra.mxu0 %v2290
        %2318 = vmatpush.bf16.msra.mxu0 %v2289
        %2319 = vmatpush.bf16.msra.mxu0 %v2288
        %2320 = vmatpush.bf16.msra.mxu0 %v2287
        %2321 = vmatpush.bf16.msra.mxu0 %v2286
        %2322 = vmatpush.bf16.msra.mxu0 %v2285
        %2323 = vmatpush.bf16.msra.mxu0 %v2284
        %2324 = vmatmul.bf16.gmra.mxu0 %v2168
        %v2325 = vpop.f32.mrf.mxu0
        %v2326 = vadd.f32 %v2218, %v2325
        %v2327 = vpop.f32.mrf.mxu0
        %v2328 = vadd.f32 %v2218, %v2327
        %2329 = vmatmul.bf16.gmra.mxu0 %v2170
        %v2330 = vpop.f32.mrf.mxu0
        %v2331 = vadd.f32 %v2218, %v2330
        %v2332 = vpop.f32.mrf.mxu0
        %v2333 = vadd.f32 %v2218, %v2332
        %2334 = vmatmul.bf16.gmra.mxu0 %v2172
        %v2335 = vpop.f32.mrf.mxu0
        %v2336 = vadd.f32 %v2218, %v2335
        %v2337 = vpop.f32.mrf.mxu0
        %v2338 = vadd.f32 %v2218, %v2337
        %2339 = vmatmul.bf16.gmra.mxu0 %v2174
        %v2340 = vpop.f32.mrf.mxu0
        %v2341 = vadd.f32 %v2218, %v2340
        %v2342 = vpop.f32.mrf.mxu0
        %v2343 = vadd.f32 %v2218, %v2342
        %2344 = vmatmul.bf16.gmra.mxu0 %v2176
        %v2345 = vpop.f32.mrf.mxu0
        %v2346 = vadd.f32 %v2218, %v2345
        %v2347 = vpop.f32.mrf.mxu0
        %v2348 = vadd.f32 %v2218, %v2347
        %2349 = vmatmul.bf16.gmra.mxu0 %v2178
        %v2350 = vpop.f32.mrf.mxu0
        %v2351 = vadd.f32 %v2218, %v2350
        %v2352 = vpop.f32.mrf.mxu0
        %v2353 = vadd.f32 %v2218, %v2352
        %2354 = vmatmul.bf16.gmra.mxu0 %v2180
        %v2355 = vpop.f32.mrf.mxu0
        %v2356 = vadd.f32 %v2218, %v2355
        %v2357 = vpop.f32.mrf.mxu0
        %v2358 = vadd.f32 %v2218, %v2357
        %2359 = vmatmul.bf16.gmra.mxu0 %v2182
        %v2360 = vpop.f32.mrf.mxu0
        %v2361 = vadd.f32 %v2218, %v2360
        %v2362 = vpop.f32.mrf.mxu0
        %v2363 = vadd.f32 %v2218, %v2362
        %2364 = vdwg.mxu0
        %2365 = vmatpush.bf16.msra.mxu0 %v2299
        %2366 = vmatpush.bf16.msra.mxu0 %v2298
        %2367 = vmatpush.bf16.msra.mxu0 %v2297
        %2368 = vmatpush.bf16.msra.mxu0 %v2296
        %2369 = vmatpush.bf16.msra.mxu0 %v2295
        %2370 = vmatpush.bf16.msra.mxu0 %v2294
        %2371 = vmatpush.bf16.msra.mxu0 %v2293
        %2372 = vmatpush.bf16.msra.mxu0 %v2292
        %2373 = vmatmul.bf16.gmra.mxu0 %v2169
        %v2374 = vpop.f32.mrf.mxu0
        %v2375 = vadd.f32 %v2326, %v2374
        %v2376 = vpop.f32.mrf.mxu0
        %v2377 = vadd.f32 %v2328, %v2376
        %2378 = vmatmul.bf16.gmra.mxu0 %v2171
        %v2379 = vpop.f32.mrf.mxu0
        %v2380 = vadd.f32 %v2331, %v2379
        %v2381 = vpop.f32.mrf.mxu0
        %v2382 = vadd.f32 %v2333, %v2381
        %2383 = vmatmul.bf16.gmra.mxu0 %v2173
        %v2384 = vpop.f32.mrf.mxu0
        %v2385 = vadd.f32 %v2336, %v2384
        %v2386 = vpop.f32.mrf.mxu0
        %v2387 = vadd.f32 %v2338, %v2386
        %2388 = vmatmul.bf16.gmra.mxu0 %v2175
        %v2389 = vpop.f32.mrf.mxu0
        %v2390 = vadd.f32 %v2341, %v2389
        %v2391 = vpop.f32.mrf.mxu0
        %v2392 = vadd.f32 %v2343, %v2391
        %2393 = vmatmul.bf16.gmra.mxu0 %v2177
        %v2394 = vpop.f32.mrf.mxu0
        %v2395 = vadd.f32 %v2346, %v2394
        %v2396 = vpop.f32.mrf.mxu0
        %v2397 = vadd.f32 %v2348, %v2396
        %2398 = vmatmul.bf16.gmra.mxu0 %v2179
        %v2399 = vpop.f32.mrf.mxu0
        %v2400 = vadd.f32 %v2351, %v2399
        %v2401 = vpop.f32.mrf.mxu0
        %v2402 = vadd.f32 %v2353, %v2401
        %2403 = vmatmul.bf16.gmra.mxu0 %v2181
        %v2404 = vpop.f32.mrf.mxu0
        %v2405 = vadd.f32 %v2356, %v2404
        %v2406 = vpop.f32.mrf.mxu0
        %v2407 = vadd.f32 %v2358, %v2406
        %2408 = vmatmul.bf16.gmra.mxu0 %v2183
        %v2409 = vpop.f32.mrf.mxu0
        %v2410 = vadd.f32 %v2361, %v2409
        %v2411 = vpop.f32.mrf.mxu0
        %v2412 = vadd.f32 %v2363, %v2411
        %2413 = vdwg.mxu0
        %2414 = vst [vmem:[%s335] sm:$0xff] %v2375
        %2415 = vst [vmem:[%s335 + $0x8] sm:$0xff] %v2377
        %2416 = vst [vmem:[%s335 + $0x10] sm:$0xff] %v2380
        %2417 = vst [vmem:[%s335 + $0x18] sm:$0xff] %v2382
        %2418 = vst [vmem:[%s335 + $0x20] sm:$0xff] %v2385
        %2419 = vst [vmem:[%s335 + $0x28] sm:$0xff] %v2387
        %2420 = vst [vmem:[%s335 + $0x30] sm:$0xff] %v2390
        %2421 = vst [vmem:[%s335 + $0x38] sm:$0xff] %v2392
        %2422 = vst [vmem:[%s335 + $0x40] sm:$0xff] %v2395
        %2423 = vst [vmem:[%s335 + $0x48] sm:$0xff] %v2397
        %2424 = vst [vmem:[%s335 + $0x50] sm:$0xff] %v2400
        %2425 = vst [vmem:[%s335 + $0x58] sm:$0xff] %v2402
        %2426 = vst [vmem:[%s335 + $0x60] sm:$0xff] %v2405
        %2427 = vst [vmem:[%s335 + $0x68] sm:$0xff] %v2407
        %2428 = vst [vmem:[%s335 + $0x70] sm:$0xff] %v2410
        %2429 = vst [vmem:[%s335 + $0x78] sm:$0xff] %v2412
        %s2430 = sand.u32 %s164, 1
        %s2431 = scalar_lea.sflag [#allocation4], %s2430
        %s2432 = sand.u32 %s164, 1
        %s2433 = smul.addr %s2432, 128
        %s2434 = scalar_lea.vmem [#allocation11], %s2433
        // Predicated region
        $region65: #{tpu_custom_call.1} parent=43 // pred_check
          %p2435 = pneg %p174
        $region66: #{tpu_custom_call.1} parent=43 // pred_check_branch
          %2437 = sbr.rel (%p2435) target = $region68
        $region67: #{tpu_custom_call.1} parent=43 // pred_region
          %s2438 = smul.u32 16, %s25
          %2440 = vsyncadd %s2431, 0
          %s2441 = smul.addr %s2438, 8
          %s2442 = scalar_lea.hbm %s6, %s2441
          %s2443 = sshll.u32 %s2434, 4
          %s2444 = int_to_ptr.vmem [resolvable:$true] %s2443
          %s2445 = sshll.u32 %s2442, 4
          %s2446 = int_to_ptr.hbm [resolvable:$true] %s2445
          %2451 = dma.vmem_to_hbm [thread:$0]  %s2444, 2048, %s2446, %s2431, 128, 128, 8
        $region68: #{tpu_custom_call.1} parent=43 // pred_fallthru
          _
      $region44: #{tpu_custom_call.1} parent=5 // pred_fallthru
        _
      %p2452 = scmp.le.s32.totalorder 2, %s20
      // Predicated region
      $region69: #{tpu_custom_call.1} parent=5 // pred_check
        %p2453 = pneg %p2452
      $region70: #{tpu_custom_call.1} parent=5 // pred_check_branch
        %2455 = sbr.rel (%p2453) target = $region72
      $region71: #{tpu_custom_call.1} parent=5 // pred_region
        %s2456 = ssub.s32 %s20, 2
        // Predicated region
        $region73: #{tpu_custom_call.1} parent=71 // pred_check
          %p2457 = pneg %p180
        $region74: #{tpu_custom_call.1} parent=71 // pred_check_branch
          %2459 = sbr.rel (%p2457) target = $region76
        $region75: #{tpu_custom_call.1} parent=71 // pred_region
          %s2460 = sand.u32 %s165, 1
          %s2461 = scalar_lea.sflag [#allocation4], %s2460
          %s2462 = sand.u32 %s165, 1
          %s2463 = smul.addr %s2462, 128
          %s2464 = scalar_lea.vmem [#allocation11], %s2463
          %2466 = dma.done %s2461, 2048
        $region76: #{tpu_custom_call.1} parent=71 // pred_fallthru
          _
      $region72: #{tpu_custom_call.1} parent=5 // pred_fallthru
        _
    $region6: #{tpu_custom_call.1} parent=1 // loop_footer
      %s24 = sadd.s32 1, %s20
    $region7: #{tpu_custom_call.1} parent=1 // loop_footer_branch
      %19 = sbr.rel target = $region3
    $region8: #{tpu_custom_call.1} parent=1 // loop_exit
      _
    %2467 = vsyncpa [#allocation3], 1
    %s2468 = scalar_lea.sflag [#allocation3], 1
    %2469 = vsyncpa %s2468, 1
    %2470 = vsyncpa [#allocation6], 1
    %2471 = vsyncpa [#allocation9], 1
    %2472 = vsyncpa [#allocation4], 1
    %s2473 = scalar_lea.sflag [#allocation4], 1
    %2474 = vsyncpa %s2473, 1

</llo_original>
